<compile_context>
chip_gen: v5e
topology: v5e:2x2
jax: 0.10.0
libtpu: 0.0.40
codegen_flags: <defaults>
</compile_context>

<pallas_src>
import math

import numpy as np
import jax
import jax.numpy as jnp
from jax.experimental import pallas as pl
from jax.experimental.pallas import tpu as pltpu


MXU_DTYPE = jnp.bfloat16   # matmul-operand dtype; jnp.float32 for strict parity


# ----------------------------------------------------------------------------
# sin/cos positional embedding (same as get_2d_sincos_pos_embed in the repo)
# ----------------------------------------------------------------------------
def _get_1d_sincos(embed_dim, pos):
    omega = np.arange(embed_dim // 2, dtype=np.float64) / (embed_dim / 2.0)
    omega = 1.0 / (10000.0 ** omega)
    pos = pos.reshape(-1)
    out = np.einsum("m,d->md", pos, omega)
    return np.concatenate([np.sin(out), np.cos(out)], axis=1)


def get_2d_sincos_pos_embed(embed_dim, grid_size, cls_token=False):
    grid_h = np.arange(grid_size, dtype=np.float64)
    grid_w = np.arange(grid_size, dtype=np.float64)
    grid = np.meshgrid(grid_w, grid_h)          # w goes first
    grid = np.stack(grid, axis=0).reshape([2, 1, grid_size, grid_size])
    emb_h = _get_1d_sincos(embed_dim // 2, grid[0])
    emb_w = _get_1d_sincos(embed_dim // 2, grid[1])
    pos = np.concatenate([emb_h, emb_w], axis=1)
    if cls_token:
        pos = np.concatenate([np.zeros([1, embed_dim]), pos], axis=0)
    return pos.astype(np.float32)


# ----------------------------------------------------------------------------
# In-kernel math helpers (all f32)
# ----------------------------------------------------------------------------
def _layernorm(x, w, b, eps=1e-5):
    # x: (N, D), w/b: (1, D); biased variance like nn.LayerNorm
    mean = jnp.mean(x, axis=-1, keepdims=True)
    xc = x - mean
    var = jnp.mean(xc * xc, axis=-1, keepdims=True)
    return xc * jax.lax.rsqrt(var + eps) * w + b


def _erf(x):
    # TODO(synk): exact lax.erf lowering on Mosaic is not guaranteed; use
    # Abramowitz & Stegun 7.1.26 (|err| < 1.5e-7, within f32 rounding noise).
    a1, a2, a3, a4, a5 = 0.254829592, -0.284496736, 1.421413741, -1.453152027, 1.061405429
    p = 0.3275911
    sgn = jnp.where(x >= 0.0, 1.0, -1.0)
    ax = jnp.abs(x)
    t = 1.0 / (1.0 + p * ax)
    poly = t * (a1 + t * (a2 + t * (a3 + t * (a4 + t * a5))))
    return sgn * (1.0 - poly * jnp.exp(-ax * ax))


def _gelu_exact(x):
    # matches torch.nn.GELU() default (erf form), up to the erf approximation
    return 0.5 * x * (1.0 + _erf(x * (1.0 / math.sqrt(2.0))))


# ----------------------------------------------------------------------------
# Fused per-image forward kernel (one grid step == one image)
# ----------------------------------------------------------------------------
def make_fused_vit_kernel(*, ntok, dim, hidden, patch_dim, depth,
                          heads_per_layer, d_pad, mxu_dtype, eps=1e-5):
    D = dim
    l_rows = 3 * D + hidden            # per-layer weight-slab rows
    n_pad = d_pad - D

    def kernel(p_ref, w_ref, c_ref, out_ref):
        f32 = jnp.float32
        pad = jnp.zeros((ntok, n_pad), f32) if n_pad else None

        def store(layer_idx, x):
            # lane-dense store: pad real D lanes up to a multiple of 128
            v = x if pad is None else jnp.concatenate([x, pad], axis=-1)
            out_ref[layer_idx] = v

        # ---- patch embed + pos embed + cls token (one matmul + one add) ----
        # The zero pseudo-patch row + tok_add row 0 produce the cls token.
        patches = p_ref[...]                                  # (Ntok, Cpp), mxu dtype
        patch_w = w_ref[0:patch_dim, 0:D]                     # (Cpp, D),    mxu dtype
        tok_add = c_ref[depth * 8:depth * 8 + ntok, 0:D]      # (Ntok, D),   f32
        x = (jnp.dot(patches, patch_w, preferred_element_type=f32) + tok_add)
        store(0, x)

        for l in range(depth):                                # static unroll
            heads = heads_per_layer[l]
            hd = D // heads
            r0 = patch_dim + l * l_rows
            c0 = l * 8

            wqkv = w_ref[r0:r0 + D, 0:3 * D]                  # (D, 3D) q-cols pre-scaled
            wproj = w_ref[r0 + D:r0 + 2 * D, 0:D]             # (D, D)
            fc1_w = w_ref[r0 + 2 * D:r0 + 3 * D, 0:hidden]    # (D, H)
            fc2_w = w_ref[r0 + 3 * D:r0 + 3 * D + hidden, 0:D]  # (H, D)

            ln1_w = c_ref[c0 + 0:c0 + 1, 0:D]
            ln1_b = c_ref[c0 + 1:c0 + 2, 0:D]
            qkv_b = c_ref[c0 + 2:c0 + 3, 0:3 * D]             # q-part pre-scaled
            proj_b = c_ref[c0 + 3:c0 + 4, 0:D]
            ln2_w = c_ref[c0 + 4:c0 + 5, 0:D]
            ln2_b = c_ref[c0 + 5:c0 + 6, 0:D]
            fc1_b = c_ref[c0 + 6:c0 + 7, 0:hidden]
            fc2_b = c_ref[c0 + 7:c0 + 8, 0:D]

            # -------- attention (drop_path / dropouts are identity) ----------
            h = _layernorm(x, ln1_w, ln1_b, eps)
            qkv = (jnp.dot(h.astype(mxu_dtype), wqkv,
                           preferred_element_type=f32) + qkv_b)   # (Ntok, 3D)
            q_al = qkv[:, 0:D].astype(mxu_dtype)
            k_al = qkv[:, D:2 * D].astype(mxu_dtype)
            v_al = qkv[:, 2 * D:3 * D].astype(mxu_dtype)

            head_out = []
            for hh in range(heads):                           # only score/context per head
                qh = q_al[:, hh * hd:(hh + 1) * hd]
                kh = k_al[:, hh * hd:(hh + 1) * hd]
                vh = v_al[:, hh * hd:(hh + 1) * hd]
                s = jnp.einsum("qd,kd->qk", qh, kh,
                               preferred_element_type=f32)    # (Ntok, Ntok), f32
                s = s - jnp.max(s, axis=-1, keepdims=True)
                e = jnp.exp(s)
                p = e * pl.reciprocal(jnp.sum(e, axis=-1, keepdims=True),
                                      approx=True)
                head_out.append(jnp.dot(p.astype(mxu_dtype), vh,
                                        preferred_element_type=f32))
            attn = jnp.concatenate(head_out, axis=-1)         # concat heads -> (Ntok, D)
            x = x + jnp.dot(attn.astype(mxu_dtype), wproj,
                            preferred_element_type=f32) + proj_b

            # -------- MLP ----------------------------------------------------
            h2 = _layernorm(x, ln2_w, ln2_b, eps)
            m = jnp.dot(h2.astype(mxu_dtype), fc1_w,
                        preferred_element_type=f32) + fc1_b
            m = _gelu_exact(m)
            m = jnp.dot(m.astype(mxu_dtype), fc2_w,
                        preferred_element_type=f32) + fc2_b
            x = x + m

            store(l + 1, x)

    return kernel


# ----------------------------------------------------------------------------
# Parameter construction: torch-layout init, packed ONCE into two slabs
# ----------------------------------------------------------------------------
def xavier_uniform(key, shape):
    fan_out, fan_in = shape
    a = math.sqrt(6.0 / (fan_in + fan_out))
    return jax.random.uniform(key, shape, jnp.float32, -a, a)


def build_params(key, *, img_size, patch_size, in_chans, embed_dim,
                 depth, num_heads, last_heads, mlp_ratio, mxu_dtype=MXU_DTYPE):
    D = embed_dim
    grid_size = img_size // patch_size
    ntok = grid_size * grid_size + 1
    hidden = int(D * mlp_ratio)
    patch_dim = in_chans * patch_size * patch_size
    assert D % 8 == 0 and hidden % 8 == 0 and patch_dim % 8 == 0

    slab_w = -(-max(3 * D, hidden) // 128) * 128          # lane width of both slabs
    l_rows = 3 * D + hidden
    w_rows = patch_dim + depth * l_rows
    c_rows = depth * 8 + ntok

    heads_per_layer = [num_heads] * (depth - 1) + [last_heads]
    keys = jax.random.split(key, 2 + 4 * depth)

    patch_w = np.asarray(xavier_uniform(keys[0], (D, patch_dim)))   # Conv2d weight view (D, C*p*p)
    patch_b = np.zeros((D,), np.float32)
    cls_token = np.asarray(0.02 * jax.random.normal(keys[1], (D,), jnp.float32))
    pos_embed = get_2d_sincos_pos_embed(D, grid_size, cls_token=True)  # (ntok, D)

    w_slab = np.zeros((w_rows, slab_w), np.float32)
    c_slab = np.zeros((c_rows, slab_w), np.float32)

    # patch-embed weight, pre-transposed for x @ W
    w_slab[0:patch_dim, 0:D] = patch_w.T

    for l, heads in enumerate(heads_per_layer):
        hd = D // heads
        scale = hd ** -0.5
        k = keys[2 + 4 * l: 2 + 4 * (l + 1)]

        qkv_w = np.asarray(xavier_uniform(k[0], (3 * D, D)))
        proj_w = np.asarray(xavier_uniform(k[1], (D, D)))
        fc1_w = np.asarray(xavier_uniform(k[2], (hidden, D)))
        fc2_w = np.asarray(xavier_uniform(k[3], (D, hidden)))
        qkv_b = np.zeros((3 * D,), np.float32)
        proj_b = np.zeros((D,), np.float32)
        fc1_b = np.zeros((hidden,), np.float32)
        fc2_b = np.zeros((D,), np.float32)

        wqkv = qkv_w.T.copy()                # (D, 3D) = [Wq^T | Wk^T | Wv^T]
        wqkv[:, 0:D] *= scale                # fold attention scale into Q weights
        qkv_b_k = qkv_b.copy()
        qkv_b_k[0:D] *= scale                # ... and Q bias

        r0 = patch_dim + l * l_rows
        w_slab[r0:r0 + D, 0:3 * D] = wqkv
        w_slab[r0 + D:r0 + 2 * D, 0:D] = proj_w.T
        w_slab[r0 + 2 * D:r0 + 3 * D, 0:hidden] = fc1_w.T
        w_slab[r0 + 3 * D:r0 + 3 * D + hidden, 0:D] = fc2_w.T

        c0 = l * 8
        c_slab[c0 + 0, 0:D] = 1.0            # ln1 weight
        c_slab[c0 + 1, 0:D] = 0.0            # ln1 bias
        c_slab[c0 + 2, 0:3 * D] = qkv_b_k
        c_slab[c0 + 3, 0:D] = proj_b
        c_slab[c0 + 4, 0:D] = 1.0            # ln2 weight
        c_slab[c0 + 5, 0:D] = 0.0            # ln2 bias
        c_slab[c0 + 6, 0:hidden] = fc1_b
        c_slab[c0 + 7, 0:D] = fc2_b

    # fused per-token additive term: row 0 = cls_token + pos[0] (cls row),
    # rows 1.. = patch bias + pos[i]  (fuses pos add + cls + conv bias)
    t0 = depth * 8
    c_slab[t0, 0:D] = cls_token + pos_embed[0]
    c_slab[t0 + 1:t0 + ntok, 0:D] = pos_embed[1:] + patch_b[None, :]

    return dict(
        w_slab=jnp.asarray(w_slab, dtype=mxu_dtype),   # MXU operands (bf16 by default)
        c_slab=jnp.asarray(c_slab),                    # biases / LN / tok_add stay f32
        heads_per_layer=tuple(heads_per_layer),
        patch_size=patch_size, embed_dim=D, hidden=hidden,
        patch_dim=patch_dim, ntok=ntok, depth=depth,
        slab_w=slab_w, mxu_dtype=mxu_dtype,
    )


# ----------------------------------------------------------------------------
# Forward (== TinyMIMViT.forward_encoder): returns list of per-layer tokens
# ----------------------------------------------------------------------------
def tinymim_forward(imgs, params):
    B, C, H, W = imgs.shape
    psz = params["patch_size"]
    D = params["embed_dim"]
    hidden = params["hidden"]
    patch_dim = params["patch_dim"]
    ntok = params["ntok"]
    depth = params["depth"]
    slab_w = params["slab_w"]
    mxu_dtype = params["mxu_dtype"]
    n_patch = (H // psz) * (W // psz)
    assert n_patch + 1 == ntok and C * psz * psz == patch_dim

    # Conv2d(kernel=stride=patch) == linear over (C, p, p)-ordered patch vectors;
    # prepend a zero "pseudo patch" row per image at the cls position so the
    # whole token matrix falls out of one in-kernel matmul + tok_add.
    patches = (imgs.reshape(B, C, H // psz, psz, W // psz, psz)
                   .transpose(0, 2, 4, 1, 3, 5)
                   .reshape(B, n_patch, patch_dim))
    patches = jnp.concatenate(
        [jnp.zeros((B, 1, patch_dim), patches.dtype), patches], axis=1)
    patches = patches.astype(mxu_dtype)

    d_pad = -(-D // 128) * 128                       # lane-dense output width
    w_rows = params["w_slab"].shape[0]
    c_rows = params["c_slab"].shape[0]

    kernel = make_fused_vit_kernel(
        ntok=ntok, dim=D, hidden=hidden, patch_dim=patch_dim, depth=depth,
        heads_per_layer=params["heads_per_layer"], d_pad=d_pad,
        mxu_dtype=mxu_dtype)

    out = pl.pallas_call(
        kernel,
        grid=(B,),                                   # one image per grid step
        out_shape=jax.ShapeDtypeStruct((depth + 1, B, ntok, d_pad), jnp.float32),
        in_specs=[
            # per-image patch block
            pl.BlockSpec((None, ntok, patch_dim), lambda b: (b, 0, 0)),
            # weight / const slabs: constant index -> stay resident across steps
            pl.BlockSpec((w_rows, slab_w), lambda b: (0, 0)),
            pl.BlockSpec((c_rows, slab_w), lambda b: (0, 0)),
        ],
        out_specs=pl.BlockSpec((depth + 1, None, ntok, d_pad),
                               lambda b: (0, b, 0, 0)),
        compiler_params=pltpu.CompilerParams(
            dimension_semantics=("parallel",),       # v7x: images split across TCs
            vmem_limit_bytes=32 * 1024 * 1024),
    )(patches, params["w_slab"], params["c_slab"])

    out = out[..., :D]                               # drop lane padding
    return [out[i] for i in range(depth + 1)]


# ----------------------------------------------------------------------------
if __name__ == "__main__":
    # Small config consistent with the module's structure:
    #   img 16x16, patch 4 -> 16 patches (+1 cls = 17 tokens), embed_dim 32,
    #   depth 2 (first block 4 heads, last block 2 heads), mlp_ratio 4.
    cfg = dict(img_size=16, patch_size=4, in_chans=4, embed_dim=32,
               depth=2, num_heads=4, last_heads=2, mlp_ratio=4.0)

    key = jax.random.PRNGKey(0)
    k_param, k_img = jax.random.split(key)
    params = build_params(k_param, **cfg)

    imgs = jax.random.normal(
        k_img, (2, cfg["in_chans"], cfg["img_size"], cfg["img_size"]),
        dtype=jnp.float32)

    # jit the whole forward (params closed over -> static config stays python)
    fwd = jax.jit(lambda im: tinymim_forward(im, params))
    outs = fwd(imgs)
    for o in outs:
        jax.block_until_ready(o)

    expected = (2, (cfg["img_size"] // cfg["patch_size"]) ** 2 + 1,
                cfg["embed_dim"])
    assert len(outs) == cfg["depth"] + 1
    assert all(o.shape == expected for o in outs)
    assert all(bool(jnp.all(jnp.isfinite(o))) for o in outs)
    print("KERNEL_OK")
</pallas_src>

<mosaic_0001>
module attributes {stable_mosaic.version = 11 : i64} {
  func.func @kernel(%arg0: i32, %arg1: memref<1x17x64xbf16, #tpu.memory_space<vmem>>, %arg2: memref<512x128xbf16, #tpu.memory_space<vmem>>, %arg3: memref<33x128xf32, #tpu.memory_space<vmem>>, %arg4: memref<3x1x17x128xf32, #tpu.memory_space<vmem>>) attributes {dimension_semantics = [#tpu.dimension_semantics<parallel>], iteration_bounds = array<i64: 2>, scalar_prefetch = 0 : i64, scratch_operands = 0 : i64, tpu.core_type = #tpu.core_type<tc>, window_params = [{transform_indices = @transform_0, window_bounds = array<i64: 1, 17, 64>}, {pipeline_mode = #tpu.pipeline_mode<synchronous>, transform_indices = @transform_1, window_bounds = array<i64: 512, 128>}, {pipeline_mode = #tpu.pipeline_mode<synchronous>, transform_indices = @transform_2, window_bounds = array<i64: 33, 128>}, {transform_indices = @transform_3, window_bounds = array<i64: 3, 1, 17, 128>}]} {
    %cst = arith.constant 0.000000e+00 : f32
    %0 = vector.broadcast %cst : f32 to vector<17x96xf32>
    %c0 = arith.constant 0 : index
    %c0_0 = arith.constant 0 : index
    %c0_1 = arith.constant 0 : index
    %1 = vector.load %arg1[%c0, %c0_0, %c0_1] : memref<1x17x64xbf16, #tpu.memory_space<vmem>>, vector<1x17x64xbf16>
    %2 = vector.shape_cast %1 : vector<1x17x64xbf16> to vector<17x64xbf16>
    %c0_2 = arith.constant 0 : index
    %c0_3 = arith.constant 0 : index
    %3 = vector.load %arg2[%c0_2, %c0_3] : memref<512x128xbf16, #tpu.memory_space<vmem>>, vector<64x32xbf16>
    %c16 = arith.constant 16 : index
    %c0_4 = arith.constant 0 : index
    %4 = vector.load %arg3[%c16, %c0_4] : memref<33x128xf32, #tpu.memory_space<vmem>>, vector<17x32xf32>
    %cst_5 = arith.constant dense<0.000000e+00> : vector<17x32xf32>
    %5 = tpu.matmul %2, %3, %cst_5 {dimension_numbers = #tpu.dot_dimension_numbers<[1], [0], [0], [1], [0, 0, 1, 1], [], []>} : vector<17x64xbf16>, vector<64x32xbf16>, vector<17x32xf32> -> vector<17x32xf32>
    %6 = arith.addf %5, %4 : vector<17x32xf32>
    %7 = tpu.concatenate %6, %0 in 1 : vector<17x32xf32>, vector<17x96xf32> -> vector<17x128xf32>
    %c0_6 = arith.constant 0 : index
    %c0_7 = arith.constant 0 : index
    %c0_8 = arith.constant 0 : index
    %c0_9 = arith.constant 0 : index
    %8 = vector.load %arg4[%c0_6, %c0_7, %c0_8, %c0_9] : memref<3x1x17x128xf32, #tpu.memory_space<vmem>>, vector<1x1x17x128xf32>
    %9 = vector.shape_cast %8 : vector<1x1x17x128xf32> to vector<17x128xf32>
    %10 = vector.shape_cast %7 : vector<17x128xf32> to vector<1x1x17x128xf32>
    tpu.vector_store %arg4[%c0_6, %c0_7, %c0_8, %c0_9], %10 {strides = array<i32>} : memref<3x1x17x128xf32, #tpu.memory_space<vmem>>, vector<1x1x17x128xf32>,
    %c64 = arith.constant 64 : index
    %c0_10 = arith.constant 0 : index
    %11 = vector.load %arg2[%c64, %c0_10] : memref<512x128xbf16, #tpu.memory_space<vmem>>, vector<32x96xbf16>
    %c96 = arith.constant 96 : index
    %c0_11 = arith.constant 0 : index
    %12 = vector.load %arg2[%c96, %c0_11] : memref<512x128xbf16, #tpu.memory_space<vmem>>, vector<32x32xbf16>
    %c128 = arith.constant 128 : index
    %c0_12 = arith.constant 0 : index
    %13 = vector.load %arg2[%c128, %c0_12] : memref<512x128xbf16, #tpu.memory_space<vmem>>, vector<32x128xbf16>
    %c160 = arith.constant 160 : index
    %c0_13 = arith.constant 0 : index
    %14 = vector.load %arg2[%c160, %c0_13] : memref<512x128xbf16, #tpu.memory_space<vmem>>, vector<128x32xbf16>
    %c0_14 = arith.constant 0 : index
    %c0_15 = arith.constant 0 : index
    %15 = vector.load %arg3[%c0_14, %c0_15] : memref<33x128xf32, #tpu.memory_space<vmem>>, vector<1x32xf32>
    %c1 = arith.constant 1 : index
    %c0_16 = arith.constant 0 : index
    %16 = vector.load %arg3[%c1, %c0_16] : memref<33x128xf32, #tpu.memory_space<vmem>>, vector<1x32xf32>
    %c2 = arith.constant 2 : index
    %c0_17 = arith.constant 0 : index
    %17 = vector.load %arg3[%c2, %c0_17] : memref<33x128xf32, #tpu.memory_space<vmem>>, vector<1x96xf32>
    %c3 = arith.constant 3 : index
    %c0_18 = arith.constant 0 : index
    %18 = vector.load %arg3[%c3, %c0_18] : memref<33x128xf32, #tpu.memory_space<vmem>>, vector<1x32xf32>
    %c4 = arith.constant 4 : index
    %c0_19 = arith.constant 0 : index
    %19 = vector.load %arg3[%c4, %c0_19] : memref<33x128xf32, #tpu.memory_space<vmem>>, vector<1x32xf32>
    %c5 = arith.constant 5 : index
    %c0_20 = arith.constant 0 : index
    %20 = vector.load %arg3[%c5, %c0_20] : memref<33x128xf32, #tpu.memory_space<vmem>>, vector<1x32xf32>
    %c6 = arith.constant 6 : index
    %c0_21 = arith.constant 0 : index
    %21 = vector.load %arg3[%c6, %c0_21] : memref<33x128xf32, #tpu.memory_space<vmem>>, vector<1x128xf32>
    %c7 = arith.constant 7 : index
    %c0_22 = arith.constant 0 : index
    %22 = vector.load %arg3[%c7, %c0_22] : memref<33x128xf32, #tpu.memory_space<vmem>>, vector<1x32xf32>
    %cst_23 = arith.constant dense<0.000000e+00> : vector<17xf32>
    %23 = vector.multi_reduction <add>, %6, %cst_23 [1] : vector<17x32xf32> to vector<17xf32>
    %24 = vector.shape_cast %23 : vector<17xf32> to vector<17x1xf32>
    %cst_24 = arith.constant 3.200000e+01 : f32
    %25 = vector.broadcast %cst_24 : f32 to vector<17x1xf32>
    %26 = arith.divf %24, %25 : vector<17x1xf32>
    %27 = vector.broadcast %26 : vector<17x1xf32> to vector<17x32xf32>
    %28 = arith.subf %6, %27 : vector<17x32xf32>
    %29 = arith.mulf %28, %28 : vector<17x32xf32>
    %cst_25 = arith.constant dense<0.000000e+00> : vector<17xf32>
    %30 = vector.multi_reduction <add>, %29, %cst_25 [1] : vector<17x32xf32> to vector<17xf32>
    %31 = vector.shape_cast %30 : vector<17xf32> to vector<17x1xf32>
    %cst_26 = arith.constant 3.200000e+01 : f32
    %32 = vector.broadcast %cst_26 : f32 to vector<17x1xf32>
    %33 = arith.divf %31, %32 : vector<17x1xf32>
    %cst_27 = arith.constant 9.99999974E-6 : f32
    %34 = vector.broadcast %cst_27 : f32 to vector<17x1xf32>
    %35 = arith.addf %33, %34 : vector<17x1xf32>
    %36 = math.rsqrt %35 : vector<17x1xf32>
    %37 = vector.broadcast %36 : vector<17x1xf32> to vector<17x32xf32>
    %38 = arith.mulf %28, %37 : vector<17x32xf32>
    %39 = vector.broadcast %15 : vector<1x32xf32> to vector<17x32xf32>
    %40 = arith.mulf %38, %39 : vector<17x32xf32>
    %41 = vector.broadcast %16 : vector<1x32xf32> to vector<17x32xf32>
    %42 = arith.addf %40, %41 : vector<17x32xf32>
    %43 = arith.truncf %42 : vector<17x32xf32> to vector<17x32xbf16>
    %cst_28 = arith.constant dense<0.000000e+00> : vector<17x96xf32>
    %44 = tpu.matmul %43, %11, %cst_28 {dimension_numbers = #tpu.dot_dimension_numbers<[1], [0], [0], [1], [0, 0, 1, 1], [], []>} : vector<17x32xbf16>, vector<32x96xbf16>, vector<17x96xf32> -> vector<17x96xf32>
    %45 = vector.broadcast %17 : vector<1x96xf32> to vector<17x96xf32>
    %46 = arith.addf %44, %45 : vector<17x96xf32>
    %47 = vector.extract_strided_slice %46 {offsets = [0, 0], sizes = [17, 32], strides = [1, 1]} : vector<17x96xf32> to vector<17x32xf32>
    %48 = arith.truncf %47 : vector<17x32xf32> to vector<17x32xbf16>
    %49 = vector.extract_strided_slice %46 {offsets = [0, 32], sizes = [17, 32], strides = [1, 1]} : vector<17x96xf32> to vector<17x32xf32>
    %50 = arith.truncf %49 : vector<17x32xf32> to vector<17x32xbf16>
    %51 = vector.extract_strided_slice %46 {offsets = [0, 64], sizes = [17, 32], strides = [1, 1]} : vector<17x96xf32> to vector<17x32xf32>
    %52 = arith.truncf %51 : vector<17x32xf32> to vector<17x32xbf16>
    %53 = vector.extract_strided_slice %48 {offsets = [0, 0], sizes = [17, 8], strides = [1, 1]} : vector<17x32xbf16> to vector<17x8xbf16>
    %54 = vector.extract_strided_slice %50 {offsets = [0, 0], sizes = [17, 8], strides = [1, 1]} : vector<17x32xbf16> to vector<17x8xbf16>
    %55 = vector.extract_strided_slice %52 {offsets = [0, 0], sizes = [17, 8], strides = [1, 1]} : vector<17x32xbf16> to vector<17x8xbf16>
    "tpu.trace_start"() <{level = 10 : i32, message = "qd,kd->qk"}> : () -> ()
    %cst_29 = arith.constant dense<0.000000e+00> : vector<17x17xf32>
    %56 = tpu.matmul %53, %54, %cst_29 {dimension_numbers = #tpu.dot_dimension_numbers<[1], [1], [0], [0], [0, 0, 1, 0], [], []>} : vector<17x8xbf16>, vector<17x8xbf16>, vector<17x17xf32> -> vector<17x17xf32>
    "tpu.trace_stop"() : () -> ()
    %cst_30 = arith.constant dense<0xFF800000> : vector<17xf32>
    %57 = vector.multi_reduction <maximumf>, %56, %cst_30 [1] : vector<17x17xf32> to vector<17xf32>
    %58 = vector.shape_cast %57 : vector<17xf32> to vector<17x1xf32>
    %59 = vector.broadcast %58 : vector<17x1xf32> to vector<17x17xf32>
    %60 = arith.subf %56, %59 : vector<17x17xf32>
    %61 = math.exp %60 : vector<17x17xf32>
    %cst_31 = arith.constant dense<0.000000e+00> : vector<17xf32>
    %62 = vector.multi_reduction <add>, %61, %cst_31 [1] : vector<17x17xf32> to vector<17xf32>
    %63 = vector.shape_cast %62 : vector<17xf32> to vector<17x1xf32>
    %64 = tpu.reciprocal %63 {approx = true} : vector<17x1xf32> -> vector<17x1xf32>
    %65 = vector.broadcast %64 : vector<17x1xf32> to vector<17x17xf32>
    %66 = arith.mulf %61, %65 : vector<17x17xf32>
    %67 = arith.truncf %66 : vector<17x17xf32> to vector<17x17xbf16>
    %cst_32 = arith.constant dense<0.000000e+00> : vector<17x8xf32>
    %68 = tpu.matmul %67, %55, %cst_32 {dimension_numbers = #tpu.dot_dimension_numbers<[1], [0], [0], [1], [0, 0, 1, 1], [], []>} : vector<17x17xbf16>, vector<17x8xbf16>, vector<17x8xf32> -> vector<17x8xf32>
    %69 = vector.extract_strided_slice %48 {offsets = [0, 8], sizes = [17, 8], strides = [1, 1]} : vector<17x32xbf16> to vector<17x8xbf16>
    %70 = vector.extract_strided_slice %50 {offsets = [0, 8], sizes = [17, 8], strides = [1, 1]} : vector<17x32xbf16> to vector<17x8xbf16>
    %71 = vector.extract_strided_slice %52 {offsets = [0, 8], sizes = [17, 8], strides = [1, 1]} : vector<17x32xbf16> to vector<17x8xbf16>
    "tpu.trace_start"() <{level = 10 : i32, message = "qd,kd->qk"}> : () -> ()
    %cst_33 = arith.constant dense<0.000000e+00> : vector<17x17xf32>
    %72 = tpu.matmul %69, %70, %cst_33 {dimension_numbers = #tpu.dot_dimension_numbers<[1], [1], [0], [0], [0, 0, 1, 0], [], []>} : vector<17x8xbf16>, vector<17x8xbf16>, vector<17x17xf32> -> vector<17x17xf32>
    "tpu.trace_stop"() : () -> ()
    %cst_34 = arith.constant dense<0xFF800000> : vector<17xf32>
    %73 = vector.multi_reduction <maximumf>, %72, %cst_34 [1] : vector<17x17xf32> to vector<17xf32>
    %74 = vector.shape_cast %73 : vector<17xf32> to vector<17x1xf32>
    %75 = vector.broadcast %74 : vector<17x1xf32> to vector<17x17xf32>
    %76 = arith.subf %72, %75 : vector<17x17xf32>
    %77 = math.exp %76 : vector<17x17xf32>
    %cst_35 = arith.constant dense<0.000000e+00> : vector<17xf32>
    %78 = vector.multi_reduction <add>, %77, %cst_35 [1] : vector<17x17xf32> to vector<17xf32>
    %79 = vector.shape_cast %78 : vector<17xf32> to vector<17x1xf32>
    %80 = tpu.reciprocal %79 {approx = true} : vector<17x1xf32> -> vector<17x1xf32>
    %81 = vector.broadcast %80 : vector<17x1xf32> to vector<17x17xf32>
    %82 = arith.mulf %77, %81 : vector<17x17xf32>
    %83 = arith.truncf %82 : vector<17x17xf32> to vector<17x17xbf16>
    %cst_36 = arith.constant dense<0.000000e+00> : vector<17x8xf32>
    %84 = tpu.matmul %83, %71, %cst_36 {dimension_numbers = #tpu.dot_dimension_numbers<[1], [0], [0], [1], [0, 0, 1, 1], [], []>} : vector<17x17xbf16>, vector<17x8xbf16>, vector<17x8xf32> -> vector<17x8xf32>
    %85 = vector.extract_strided_slice %48 {offsets = [0, 16], sizes = [17, 8], strides = [1, 1]} : vector<17x32xbf16> to vector<17x8xbf16>
    %86 = vector.extract_strided_slice %50 {offsets = [0, 16], sizes = [17, 8], strides = [1, 1]} : vector<17x32xbf16> to vector<17x8xbf16>
    %87 = vector.extract_strided_slice %52 {offsets = [0, 16], sizes = [17, 8], strides = [1, 1]} : vector<17x32xbf16> to vector<17x8xbf16>
    "tpu.trace_start"() <{level = 10 : i32, message = "qd,kd->qk"}> : () -> ()
    %cst_37 = arith.constant dense<0.000000e+00> : vector<17x17xf32>
    %88 = tpu.matmul %85, %86, %cst_37 {dimension_numbers = #tpu.dot_dimension_numbers<[1], [1], [0], [0], [0, 0, 1, 0], [], []>} : vector<17x8xbf16>, vector<17x8xbf16>, vector<17x17xf32> -> vector<17x17xf32>
    "tpu.trace_stop"() : () -> ()
    %cst_38 = arith.constant dense<0xFF800000> : vector<17xf32>
    %89 = vector.multi_reduction <maximumf>, %88, %cst_38 [1] : vector<17x17xf32> to vector<17xf32>
    %90 = vector.shape_cast %89 : vector<17xf32> to vector<17x1xf32>
    %91 = vector.broadcast %90 : vector<17x1xf32> to vector<17x17xf32>
    %92 = arith.subf %88, %91 : vector<17x17xf32>
    %93 = math.exp %92 : vector<17x17xf32>
    %cst_39 = arith.constant dense<0.000000e+00> : vector<17xf32>
    %94 = vector.multi_reduction <add>, %93, %cst_39 [1] : vector<17x17xf32> to vector<17xf32>
    %95 = vector.shape_cast %94 : vector<17xf32> to vector<17x1xf32>
    %96 = tpu.reciprocal %95 {approx = true} : vector<17x1xf32> -> vector<17x1xf32>
    %97 = vector.broadcast %96 : vector<17x1xf32> to vector<17x17xf32>
    %98 = arith.mulf %93, %97 : vector<17x17xf32>
    %99 = arith.truncf %98 : vector<17x17xf32> to vector<17x17xbf16>
    %cst_40 = arith.constant dense<0.000000e+00> : vector<17x8xf32>
    %100 = tpu.matmul %99, %87, %cst_40 {dimension_numbers = #tpu.dot_dimension_numbers<[1], [0], [0], [1], [0, 0, 1, 1], [], []>} : vector<17x17xbf16>, vector<17x8xbf16>, vector<17x8xf32> -> vector<17x8xf32>
    %101 = vector.extract_strided_slice %48 {offsets = [0, 24], sizes = [17, 8], strides = [1, 1]} : vector<17x32xbf16> to vector<17x8xbf16>
    %102 = vector.extract_strided_slice %50 {offsets = [0, 24], sizes = [17, 8], strides = [1, 1]} : vector<17x32xbf16> to vector<17x8xbf16>
    %103 = vector.extract_strided_slice %52 {offsets = [0, 24], sizes = [17, 8], strides = [1, 1]} : vector<17x32xbf16> to vector<17x8xbf16>
    "tpu.trace_start"() <{level = 10 : i32, message = "qd,kd->qk"}> : () -> ()
    %cst_41 = arith.constant dense<0.000000e+00> : vector<17x17xf32>
    %104 = tpu.matmul %101, %102, %cst_41 {dimension_numbers = #tpu.dot_dimension_numbers<[1], [1], [0], [0], [0, 0, 1, 0], [], []>} : vector<17x8xbf16>, vector<17x8xbf16>, vector<17x17xf32> -> vector<17x17xf32>
    "tpu.trace_stop"() : () -> ()
    %cst_42 = arith.constant dense<0xFF800000> : vector<17xf32>
    %105 = vector.multi_reduction <maximumf>, %104, %cst_42 [1] : vector<17x17xf32> to vector<17xf32>
    %106 = vector.shape_cast %105 : vector<17xf32> to vector<17x1xf32>
    %107 = vector.broadcast %106 : vector<17x1xf32> to vector<17x17xf32>
    %108 = arith.subf %104, %107 : vector<17x17xf32>
    %109 = math.exp %108 : vector<17x17xf32>
    %cst_43 = arith.constant dense<0.000000e+00> : vector<17xf32>
    %110 = vector.multi_reduction <add>, %109, %cst_43 [1] : vector<17x17xf32> to vector<17xf32>
    %111 = vector.shape_cast %110 : vector<17xf32> to vector<17x1xf32>
    %112 = tpu.reciprocal %111 {approx = true} : vector<17x1xf32> -> vector<17x1xf32>
    %113 = vector.broadcast %112 : vector<17x1xf32> to vector<17x17xf32>
    %114 = arith.mulf %109, %113 : vector<17x17xf32>
    %115 = arith.truncf %114 : vector<17x17xf32> to vector<17x17xbf16>
    %cst_44 = arith.constant dense<0.000000e+00> : vector<17x8xf32>
    %116 = tpu.matmul %115, %103, %cst_44 {dimension_numbers = #tpu.dot_dimension_numbers<[1], [0], [0], [1], [0, 0, 1, 1], [], []>} : vector<17x17xbf16>, vector<17x8xbf16>, vector<17x8xf32> -> vector<17x8xf32>
    %117 = tpu.concatenate %68, %84, %100, %116 in 1 : vector<17x8xf32>, vector<17x8xf32>, vector<17x8xf32>, vector<17x8xf32> -> vector<17x32xf32>
    %118 = arith.truncf %117 : vector<17x32xf32> to vector<17x32xbf16>
    %cst_45 = arith.constant dense<0.000000e+00> : vector<17x32xf32>
    %119 = tpu.matmul %118, %12, %cst_45 {dimension_numbers = #tpu.dot_dimension_numbers<[1], [0], [0], [1], [0, 0, 1, 1], [], []>} : vector<17x32xbf16>, vector<32x32xbf16>, vector<17x32xf32> -> vector<17x32xf32>
    %120 = arith.addf %6, %119 : vector<17x32xf32>
    %121 = vector.broadcast %18 : vector<1x32xf32> to vector<17x32xf32>
    %122 = arith.addf %120, %121 : vector<17x32xf32>
    %cst_46 = arith.constant dense<0.000000e+00> : vector<17xf32>
    %123 = vector.multi_reduction <add>, %122, %cst_46 [1] : vector<17x32xf32> to vector<17xf32>
    %124 = vector.shape_cast %123 : vector<17xf32> to vector<17x1xf32>
    %cst_47 = arith.constant 3.200000e+01 : f32
    %125 = vector.broadcast %cst_47 : f32 to vector<17x1xf32>
    %126 = arith.divf %124, %125 : vector<17x1xf32>
    %127 = vector.broadcast %126 : vector<17x1xf32> to vector<17x32xf32>
    %128 = arith.subf %122, %127 : vector<17x32xf32>
    %129 = arith.mulf %128, %128 : vector<17x32xf32>
    %cst_48 = arith.constant dense<0.000000e+00> : vector<17xf32>
    %130 = vector.multi_reduction <add>, %129, %cst_48 [1] : vector<17x32xf32> to vector<17xf32>
    %131 = vector.shape_cast %130 : vector<17xf32> to vector<17x1xf32>
    %cst_49 = arith.constant 3.200000e+01 : f32
    %132 = vector.broadcast %cst_49 : f32 to vector<17x1xf32>
    %133 = arith.divf %131, %132 : vector<17x1xf32>
    %cst_50 = arith.constant 9.99999974E-6 : f32
    %134 = vector.broadcast %cst_50 : f32 to vector<17x1xf32>
    %135 = arith.addf %133, %134 : vector<17x1xf32>
    %136 = math.rsqrt %135 : vector<17x1xf32>
    %137 = vector.broadcast %136 : vector<17x1xf32> to vector<17x32xf32>
    %138 = arith.mulf %128, %137 : vector<17x32xf32>
    %139 = vector.broadcast %19 : vector<1x32xf32> to vector<17x32xf32>
    %140 = arith.mulf %138, %139 : vector<17x32xf32>
    %141 = vector.broadcast %20 : vector<1x32xf32> to vector<17x32xf32>
    %142 = arith.addf %140, %141 : vector<17x32xf32>
    %143 = arith.truncf %142 : vector<17x32xf32> to vector<17x32xbf16>
    %cst_51 = arith.constant dense<0.000000e+00> : vector<17x128xf32>
    %144 = tpu.matmul %143, %13, %cst_51 {dimension_numbers = #tpu.dot_dimension_numbers<[1], [0], [0], [1], [0, 0, 1, 1], [], []>} : vector<17x32xbf16>, vector<32x128xbf16>, vector<17x128xf32> -> vector<17x128xf32>
    %145 = vector.broadcast %21 : vector<1x128xf32> to vector<17x128xf32>
    %146 = arith.addf %144, %145 : vector<17x128xf32>
    %cst_52 = arith.constant 5.000000e-01 : f32
    %147 = vector.broadcast %cst_52 : f32 to vector<17x128xf32>
    %148 = arith.mulf %147, %146 : vector<17x128xf32>
    %cst_53 = arith.constant 0.707106769 : f32
    %149 = vector.broadcast %cst_53 : f32 to vector<17x128xf32>
    %150 = arith.mulf %146, %149 : vector<17x128xf32>
    %cst_54 = arith.constant 0.000000e+00 : f32
    %151 = vector.broadcast %cst_54 : f32 to vector<17x128xf32>
    %152 = arith.cmpf oge, %150, %151 : vector<17x128xf32>
    %cst_55 = arith.constant 1.000000e+00 : f32
    %cst_56 = arith.constant -1.000000e+00 : f32
    %153 = vector.broadcast %cst_55 : f32 to vector<17x128xf32>
    %154 = vector.broadcast %cst_56 : f32 to vector<17x128xf32>
    %155 = arith.select %152, %153, %154 : vector<17x128xi1>, vector<17x128xf32>
    %156 = math.absf %150 : vector<17x128xf32>
    %cst_57 = arith.constant 0.327591091 : f32
    %157 = vector.broadcast %cst_57 : f32 to vector<17x128xf32>
    %158 = arith.mulf %157, %156 : vector<17x128xf32>
    %cst_58 = arith.constant 1.000000e+00 : f32
    %159 = vector.broadcast %cst_58 : f32 to vector<17x128xf32>
    %160 = arith.addf %159, %158 : vector<17x128xf32>
    %cst_59 = arith.constant 1.000000e+00 : f32
    %161 = vector.broadcast %cst_59 : f32 to vector<17x128xf32>
    %162 = arith.divf %161, %160 : vector<17x128xf32>
    %cst_60 = arith.constant 1.06140542 : f32
    %163 = vector.broadcast %cst_60 : f32 to vector<17x128xf32>
    %164 = arith.mulf %162, %163 : vector<17x128xf32>
    %cst_61 = arith.constant -1.45315206 : f32
    %165 = vector.broadcast %cst_61 : f32 to vector<17x128xf32>
    %166 = arith.addf %165, %164 : vector<17x128xf32>
    %167 = arith.mulf %162, %166 : vector<17x128xf32>
    %cst_62 = arith.constant 1.42141378 : f32
    %168 = vector.broadcast %cst_62 : f32 to vector<17x128xf32>
    %169 = arith.addf %168, %167 : vector<17x128xf32>
    %170 = arith.mulf %162, %169 : vector<17x128xf32>
    %cst_63 = arith.constant -0.284496725 : f32
    %171 = vector.broadcast %cst_63 : f32 to vector<17x128xf32>
    %172 = arith.addf %171, %170 : vector<17x128xf32>
    %173 = arith.mulf %162, %172 : vector<17x128xf32>
    %cst_64 = arith.constant 0.254829586 : f32
    %174 = vector.broadcast %cst_64 : f32 to vector<17x128xf32>
    %175 = arith.addf %174, %173 : vector<17x128xf32>
    %176 = arith.mulf %162, %175 : vector<17x128xf32>
    %cst_65 = arith.constant 0.000000e+00 : f32
    %177 = vector.broadcast %cst_65 : f32 to vector<17x128xf32>
    %178 = arith.subf %177, %156 : vector<17x128xf32>
    %179 = arith.mulf %178, %156 : vector<17x128xf32>
    %180 = math.exp %179 : vector<17x128xf32>
    %181 = arith.mulf %176, %180 : vector<17x128xf32>
    %cst_66 = arith.constant 1.000000e+00 : f32
    %182 = vector.broadcast %cst_66 : f32 to vector<17x128xf32>
    %183 = arith.subf %182, %181 : vector<17x128xf32>
    %184 = arith.mulf %155, %183 : vector<17x128xf32>
    %cst_67 = arith.constant 1.000000e+00 : f32
    %185 = vector.broadcast %cst_67 : f32 to vector<17x128xf32>
    %186 = arith.addf %185, %184 : vector<17x128xf32>
    %187 = arith.mulf %148, %186 : vector<17x128xf32>
    %188 = arith.truncf %187 : vector<17x128xf32> to vector<17x128xbf16>
    %cst_68 = arith.constant dense<0.000000e+00> : vector<17x32xf32>
    %189 = tpu.matmul %188, %14, %cst_68 {dimension_numbers = #tpu.dot_dimension_numbers<[1], [0], [0], [1], [0, 0, 1, 1], [], []>} : vector<17x128xbf16>, vector<128x32xbf16>, vector<17x32xf32> -> vector<17x32xf32>
    %190 = vector.broadcast %22 : vector<1x32xf32> to vector<17x32xf32>
    %191 = arith.addf %189, %190 : vector<17x32xf32>
    %192 = arith.addf %122, %191 : vector<17x32xf32>
    %193 = tpu.concatenate %192, %0 in 1 : vector<17x32xf32>, vector<17x96xf32> -> vector<17x128xf32>
    %c1_69 = arith.constant 1 : index
    %c0_70 = arith.constant 0 : index
    %c0_71 = arith.constant 0 : index
    %c0_72 = arith.constant 0 : index
    %194 = vector.load %arg4[%c1_69, %c0_70, %c0_71, %c0_72] : memref<3x1x17x128xf32, #tpu.memory_space<vmem>>, vector<1x1x17x128xf32>
    %195 = vector.shape_cast %194 : vector<1x1x17x128xf32> to vector<17x128xf32>
    %196 = vector.shape_cast %193 : vector<17x128xf32> to vector<1x1x17x128xf32>
    tpu.vector_store %arg4[%c1_69, %c0_70, %c0_71, %c0_72], %196 {strides = array<i32>} : memref<3x1x17x128xf32, #tpu.memory_space<vmem>>, vector<1x1x17x128xf32>,
    %c288 = arith.constant 288 : index
    %c0_73 = arith.constant 0 : index
    %197 = vector.load %arg2[%c288, %c0_73] : memref<512x128xbf16, #tpu.memory_space<vmem>>, vector<32x96xbf16>
    %c320 = arith.constant 320 : index
    %c0_74 = arith.constant 0 : index
    %198 = vector.load %arg2[%c320, %c0_74] : memref<512x128xbf16, #tpu.memory_space<vmem>>, vector<32x32xbf16>
    %c352 = arith.constant 352 : index
    %c0_75 = arith.constant 0 : index
    %199 = vector.load %arg2[%c352, %c0_75] : memref<512x128xbf16, #tpu.memory_space<vmem>>, vector<32x128xbf16>
    %c384 = arith.constant 384 : index
    %c0_76 = arith.constant 0 : index
    %200 = vector.load %arg2[%c384, %c0_76] : memref<512x128xbf16, #tpu.memory_space<vmem>>, vector<128x32xbf16>
    %c8 = arith.constant 8 : index
    %c0_77 = arith.constant 0 : index
    %201 = vector.load %arg3[%c8, %c0_77] : memref<33x128xf32, #tpu.memory_space<vmem>>, vector<1x32xf32>
    %c9 = arith.constant 9 : index
    %c0_78 = arith.constant 0 : index
    %202 = vector.load %arg3[%c9, %c0_78] : memref<33x128xf32, #tpu.memory_space<vmem>>, vector<1x32xf32>
    %c10 = arith.constant 10 : index
    %c0_79 = arith.constant 0 : index
    %203 = vector.load %arg3[%c10, %c0_79] : memref<33x128xf32, #tpu.memory_space<vmem>>, vector<1x96xf32>
    %c11 = arith.constant 11 : index
    %c0_80 = arith.constant 0 : index
    %204 = vector.load %arg3[%c11, %c0_80] : memref<33x128xf32, #tpu.memory_space<vmem>>, vector<1x32xf32>
    %c12 = arith.constant 12 : index
    %c0_81 = arith.constant 0 : index
    %205 = vector.load %arg3[%c12, %c0_81] : memref<33x128xf32, #tpu.memory_space<vmem>>, vector<1x32xf32>
    %c13 = arith.constant 13 : index
    %c0_82 = arith.constant 0 : index
    %206 = vector.load %arg3[%c13, %c0_82] : memref<33x128xf32, #tpu.memory_space<vmem>>, vector<1x32xf32>
    %c14 = arith.constant 14 : index
    %c0_83 = arith.constant 0 : index
    %207 = vector.load %arg3[%c14, %c0_83] : memref<33x128xf32, #tpu.memory_space<vmem>>, vector<1x128xf32>
    %c15 = arith.constant 15 : index
    %c0_84 = arith.constant 0 : index
    %208 = vector.load %arg3[%c15, %c0_84] : memref<33x128xf32, #tpu.memory_space<vmem>>, vector<1x32xf32>
    %cst_85 = arith.constant dense<0.000000e+00> : vector<17xf32>
    %209 = vector.multi_reduction <add>, %192, %cst_85 [1] : vector<17x32xf32> to vector<17xf32>
    %210 = vector.shape_cast %209 : vector<17xf32> to vector<17x1xf32>
    %cst_86 = arith.constant 3.200000e+01 : f32
    %211 = vector.broadcast %cst_86 : f32 to vector<17x1xf32>
    %212 = arith.divf %210, %211 : vector<17x1xf32>
    %213 = vector.broadcast %212 : vector<17x1xf32> to vector<17x32xf32>
    %214 = arith.subf %192, %213 : vector<17x32xf32>
    %215 = arith.mulf %214, %214 : vector<17x32xf32>
    %cst_87 = arith.constant dense<0.000000e+00> : vector<17xf32>
    %216 = vector.multi_reduction <add>, %215, %cst_87 [1] : vector<17x32xf32> to vector<17xf32>
    %217 = vector.shape_cast %216 : vector<17xf32> to vector<17x1xf32>
    %cst_88 = arith.constant 3.200000e+01 : f32
    %218 = vector.broadcast %cst_88 : f32 to vector<17x1xf32>
    %219 = arith.divf %217, %218 : vector<17x1xf32>
    %cst_89 = arith.constant 9.99999974E-6 : f32
    %220 = vector.broadcast %cst_89 : f32 to vector<17x1xf32>
    %221 = arith.addf %219, %220 : vector<17x1xf32>
    %222 = math.rsqrt %221 : vector<17x1xf32>
    %223 = vector.broadcast %222 : vector<17x1xf32> to vector<17x32xf32>
    %224 = arith.mulf %214, %223 : vector<17x32xf32>
    %225 = vector.broadcast %201 : vector<1x32xf32> to vector<17x32xf32>
    %226 = arith.mulf %224, %225 : vector<17x32xf32>
    %227 = vector.broadcast %202 : vector<1x32xf32> to vector<17x32xf32>
    %228 = arith.addf %226, %227 : vector<17x32xf32>
    %229 = arith.truncf %228 : vector<17x32xf32> to vector<17x32xbf16>
    %cst_90 = arith.constant dense<0.000000e+00> : vector<17x96xf32>
    %230 = tpu.matmul %229, %197, %cst_90 {dimension_numbers = #tpu.dot_dimension_numbers<[1], [0], [0], [1], [0, 0, 1, 1], [], []>} : vector<17x32xbf16>, vector<32x96xbf16>, vector<17x96xf32> -> vector<17x96xf32>
    %231 = vector.broadcast %203 : vector<1x96xf32> to vector<17x96xf32>
    %232 = arith.addf %230, %231 : vector<17x96xf32>
    %233 = vector.extract_strided_slice %232 {offsets = [0, 0], sizes = [17, 32], strides = [1, 1]} : vector<17x96xf32> to vector<17x32xf32>
    %234 = arith.truncf %233 : vector<17x32xf32> to vector<17x32xbf16>
    %235 = vector.extract_strided_slice %232 {offsets = [0, 32], sizes = [17, 32], strides = [1, 1]} : vector<17x96xf32> to vector<17x32xf32>
    %236 = arith.truncf %235 : vector<17x32xf32> to vector<17x32xbf16>
    %237 = vector.extract_strided_slice %232 {offsets = [0, 64], sizes = [17, 32], strides = [1, 1]} : vector<17x96xf32> to vector<17x32xf32>
    %238 = arith.truncf %237 : vector<17x32xf32> to vector<17x32xbf16>
    %239 = vector.extract_strided_slice %234 {offsets = [0, 0], sizes = [17, 16], strides = [1, 1]} : vector<17x32xbf16> to vector<17x16xbf16>
    %240 = vector.extract_strided_slice %236 {offsets = [0, 0], sizes = [17, 16], strides = [1, 1]} : vector<17x32xbf16> to vector<17x16xbf16>
    %241 = vector.extract_strided_slice %238 {offsets = [0, 0], sizes = [17, 16], strides = [1, 1]} : vector<17x32xbf16> to vector<17x16xbf16>
    "tpu.trace_start"() <{level = 10 : i32, message = "qd,kd->qk"}> : () -> ()
    %cst_91 = arith.constant dense<0.000000e+00> : vector<17x17xf32>
    %242 = tpu.matmul %239, %240, %cst_91 {dimension_numbers = #tpu.dot_dimension_numbers<[1], [1], [0], [0], [0, 0, 1, 0], [], []>} : vector<17x16xbf16>, vector<17x16xbf16>, vector<17x17xf32> -> vector<17x17xf32>
    "tpu.trace_stop"() : () -> ()
    %cst_92 = arith.constant dense<0xFF800000> : vector<17xf32>
    %243 = vector.multi_reduction <maximumf>, %242, %cst_92 [1] : vector<17x17xf32> to vector<17xf32>
    %244 = vector.shape_cast %243 : vector<17xf32> to vector<17x1xf32>
    %245 = vector.broadcast %244 : vector<17x1xf32> to vector<17x17xf32>
    %246 = arith.subf %242, %245 : vector<17x17xf32>
    %247 = math.exp %246 : vector<17x17xf32>
    %cst_93 = arith.constant dense<0.000000e+00> : vector<17xf32>
    %248 = vector.multi_reduction <add>, %247, %cst_93 [1] : vector<17x17xf32> to vector<17xf32>
    %249 = vector.shape_cast %248 : vector<17xf32> to vector<17x1xf32>
    %250 = tpu.reciprocal %249 {approx = true} : vector<17x1xf32> -> vector<17x1xf32>
    %251 = vector.broadcast %250 : vector<17x1xf32> to vector<17x17xf32>
    %252 = arith.mulf %247, %251 : vector<17x17xf32>
    %253 = arith.truncf %252 : vector<17x17xf32> to vector<17x17xbf16>
    %cst_94 = arith.constant dense<0.000000e+00> : vector<17x16xf32>
    %254 = tpu.matmul %253, %241, %cst_94 {dimension_numbers = #tpu.dot_dimension_numbers<[1], [0], [0], [1], [0, 0, 1, 1], [], []>} : vector<17x17xbf16>, vector<17x16xbf16>, vector<17x16xf32> -> vector<17x16xf32>
    %255 = vector.extract_strided_slice %234 {offsets = [0, 16], sizes = [17, 16], strides = [1, 1]} : vector<17x32xbf16> to vector<17x16xbf16>
    %256 = vector.extract_strided_slice %236 {offsets = [0, 16], sizes = [17, 16], strides = [1, 1]} : vector<17x32xbf16> to vector<17x16xbf16>
    %257 = vector.extract_strided_slice %238 {offsets = [0, 16], sizes = [17, 16], strides = [1, 1]} : vector<17x32xbf16> to vector<17x16xbf16>
    "tpu.trace_start"() <{level = 10 : i32, message = "qd,kd->qk"}> : () -> ()
    %cst_95 = arith.constant dense<0.000000e+00> : vector<17x17xf32>
    %258 = tpu.matmul %255, %256, %cst_95 {dimension_numbers = #tpu.dot_dimension_numbers<[1], [1], [0], [0], [0, 0, 1, 0], [], []>} : vector<17x16xbf16>, vector<17x16xbf16>, vector<17x17xf32> -> vector<17x17xf32>
    "tpu.trace_stop"() : () -> ()
    %cst_96 = arith.constant dense<0xFF800000> : vector<17xf32>
    %259 = vector.multi_reduction <maximumf>, %258, %cst_96 [1] : vector<17x17xf32> to vector<17xf32>
    %260 = vector.shape_cast %259 : vector<17xf32> to vector<17x1xf32>
    %261 = vector.broadcast %260 : vector<17x1xf32> to vector<17x17xf32>
    %262 = arith.subf %258, %261 : vector<17x17xf32>
    %263 = math.exp %262 : vector<17x17xf32>
    %cst_97 = arith.constant dense<0.000000e+00> : vector<17xf32>
    %264 = vector.multi_reduction <add>, %263, %cst_97 [1] : vector<17x17xf32> to vector<17xf32>
    %265 = vector.shape_cast %264 : vector<17xf32> to vector<17x1xf32>
    %266 = tpu.reciprocal %265 {approx = true} : vector<17x1xf32> -> vector<17x1xf32>
    %267 = vector.broadcast %266 : vector<17x1xf32> to vector<17x17xf32>
    %268 = arith.mulf %263, %267 : vector<17x17xf32>
    %269 = arith.truncf %268 : vector<17x17xf32> to vector<17x17xbf16>
    %cst_98 = arith.constant dense<0.000000e+00> : vector<17x16xf32>
    %270 = tpu.matmul %269, %257, %cst_98 {dimension_numbers = #tpu.dot_dimension_numbers<[1], [0], [0], [1], [0, 0, 1, 1], [], []>} : vector<17x17xbf16>, vector<17x16xbf16>, vector<17x16xf32> -> vector<17x16xf32>
    %271 = tpu.concatenate %254, %270 in 1 : vector<17x16xf32>, vector<17x16xf32> -> vector<17x32xf32>
    %272 = arith.truncf %271 : vector<17x32xf32> to vector<17x32xbf16>
    %cst_99 = arith.constant dense<0.000000e+00> : vector<17x32xf32>
    %273 = tpu.matmul %272, %198, %cst_99 {dimension_numbers = #tpu.dot_dimension_numbers<[1], [0], [0], [1], [0, 0, 1, 1], [], []>} : vector<17x32xbf16>, vector<32x32xbf16>, vector<17x32xf32> -> vector<17x32xf32>
    %274 = arith.addf %192, %273 : vector<17x32xf32>
    %275 = vector.broadcast %204 : vector<1x32xf32> to vector<17x32xf32>
    %276 = arith.addf %274, %275 : vector<17x32xf32>
    %cst_100 = arith.constant dense<0.000000e+00> : vector<17xf32>
    %277 = vector.multi_reduction <add>, %276, %cst_100 [1] : vector<17x32xf32> to vector<17xf32>
    %278 = vector.shape_cast %277 : vector<17xf32> to vector<17x1xf32>
    %cst_101 = arith.constant 3.200000e+01 : f32
    %279 = vector.broadcast %cst_101 : f32 to vector<17x1xf32>
    %280 = arith.divf %278, %279 : vector<17x1xf32>
    %281 = vector.broadcast %280 : vector<17x1xf32> to vector<17x32xf32>
    %282 = arith.subf %276, %281 : vector<17x32xf32>
    %283 = arith.mulf %282, %282 : vector<17x32xf32>
    %cst_102 = arith.constant dense<0.000000e+00> : vector<17xf32>
    %284 = vector.multi_reduction <add>, %283, %cst_102 [1] : vector<17x32xf32> to vector<17xf32>
    %285 = vector.shape_cast %284 : vector<17xf32> to vector<17x1xf32>
    %cst_103 = arith.constant 3.200000e+01 : f32
    %286 = vector.broadcast %cst_103 : f32 to vector<17x1xf32>
    %287 = arith.divf %285, %286 : vector<17x1xf32>
    %cst_104 = arith.constant 9.99999974E-6 : f32
    %288 = vector.broadcast %cst_104 : f32 to vector<17x1xf32>
    %289 = arith.addf %287, %288 : vector<17x1xf32>
    %290 = math.rsqrt %289 : vector<17x1xf32>
    %291 = vector.broadcast %290 : vector<17x1xf32> to vector<17x32xf32>
    %292 = arith.mulf %282, %291 : vector<17x32xf32>
    %293 = vector.broadcast %205 : vector<1x32xf32> to vector<17x32xf32>
    %294 = arith.mulf %292, %293 : vector<17x32xf32>
    %295 = vector.broadcast %206 : vector<1x32xf32> to vector<17x32xf32>
    %296 = arith.addf %294, %295 : vector<17x32xf32>
    %297 = arith.truncf %296 : vector<17x32xf32> to vector<17x32xbf16>
    %cst_105 = arith.constant dense<0.000000e+00> : vector<17x128xf32>
    %298 = tpu.matmul %297, %199, %cst_105 {dimension_numbers = #tpu.dot_dimension_numbers<[1], [0], [0], [1], [0, 0, 1, 1], [], []>} : vector<17x32xbf16>, vector<32x128xbf16>, vector<17x128xf32> -> vector<17x128xf32>
    %299 = vector.broadcast %207 : vector<1x128xf32> to vector<17x128xf32>
    %300 = arith.addf %298, %299 : vector<17x128xf32>
    %cst_106 = arith.constant 5.000000e-01 : f32
    %301 = vector.broadcast %cst_106 : f32 to vector<17x128xf32>
    %302 = arith.mulf %301, %300 : vector<17x128xf32>
    %cst_107 = arith.constant 0.707106769 : f32
    %303 = vector.broadcast %cst_107 : f32 to vector<17x128xf32>
    %304 = arith.mulf %300, %303 : vector<17x128xf32>
    %cst_108 = arith.constant 0.000000e+00 : f32
    %305 = vector.broadcast %cst_108 : f32 to vector<17x128xf32>
    %306 = arith.cmpf oge, %304, %305 : vector<17x128xf32>
    %cst_109 = arith.constant 1.000000e+00 : f32
    %cst_110 = arith.constant -1.000000e+00 : f32
    %307 = vector.broadcast %cst_109 : f32 to vector<17x128xf32>
    %308 = vector.broadcast %cst_110 : f32 to vector<17x128xf32>
    %309 = arith.select %306, %307, %308 : vector<17x128xi1>, vector<17x128xf32>
    %310 = math.absf %304 : vector<17x128xf32>
    %cst_111 = arith.constant 0.327591091 : f32
    %311 = vector.broadcast %cst_111 : f32 to vector<17x128xf32>
    %312 = arith.mulf %311, %310 : vector<17x128xf32>
    %cst_112 = arith.constant 1.000000e+00 : f32
    %313 = vector.broadcast %cst_112 : f32 to vector<17x128xf32>
    %314 = arith.addf %313, %312 : vector<17x128xf32>
    %cst_113 = arith.constant 1.000000e+00 : f32
    %315 = vector.broadcast %cst_113 : f32 to vector<17x128xf32>
    %316 = arith.divf %315, %314 : vector<17x128xf32>
    %cst_114 = arith.constant 1.06140542 : f32
    %317 = vector.broadcast %cst_114 : f32 to vector<17x128xf32>
    %318 = arith.mulf %316, %317 : vector<17x128xf32>
    %cst_115 = arith.constant -1.45315206 : f32
    %319 = vector.broadcast %cst_115 : f32 to vector<17x128xf32>
    %320 = arith.addf %319, %318 : vector<17x128xf32>
    %321 = arith.mulf %316, %320 : vector<17x128xf32>
    %cst_116 = arith.constant 1.42141378 : f32
    %322 = vector.broadcast %cst_116 : f32 to vector<17x128xf32>
    %323 = arith.addf %322, %321 : vector<17x128xf32>
    %324 = arith.mulf %316, %323 : vector<17x128xf32>
    %cst_117 = arith.constant -0.284496725 : f32
    %325 = vector.broadcast %cst_117 : f32 to vector<17x128xf32>
    %326 = arith.addf %325, %324 : vector<17x128xf32>
    %327 = arith.mulf %316, %326 : vector<17x128xf32>
    %cst_118 = arith.constant 0.254829586 : f32
    %328 = vector.broadcast %cst_118 : f32 to vector<17x128xf32>
    %329 = arith.addf %328, %327 : vector<17x128xf32>
    %330 = arith.mulf %316, %329 : vector<17x128xf32>
    %cst_119 = arith.constant 0.000000e+00 : f32
    %331 = vector.broadcast %cst_119 : f32 to vector<17x128xf32>
    %332 = arith.subf %331, %310 : vector<17x128xf32>
    %333 = arith.mulf %332, %310 : vector<17x128xf32>
    %334 = math.exp %333 : vector<17x128xf32>
    %335 = arith.mulf %330, %334 : vector<17x128xf32>
    %cst_120 = arith.constant 1.000000e+00 : f32
    %336 = vector.broadcast %cst_120 : f32 to vector<17x128xf32>
    %337 = arith.subf %336, %335 : vector<17x128xf32>
    %338 = arith.mulf %309, %337 : vector<17x128xf32>
    %cst_121 = arith.constant 1.000000e+00 : f32
    %339 = vector.broadcast %cst_121 : f32 to vector<17x128xf32>
    %340 = arith.addf %339, %338 : vector<17x128xf32>
    %341 = arith.mulf %302, %340 : vector<17x128xf32>
    %342 = arith.truncf %341 : vector<17x128xf32> to vector<17x128xbf16>
    %cst_122 = arith.constant dense<0.000000e+00> : vector<17x32xf32>
    %343 = tpu.matmul %342, %200, %cst_122 {dimension_numbers = #tpu.dot_dimension_numbers<[1], [0], [0], [1], [0, 0, 1, 1], [], []>} : vector<17x128xbf16>, vector<128x32xbf16>, vector<17x32xf32> -> vector<17x32xf32>
    %344 = vector.broadcast %208 : vector<1x32xf32> to vector<17x32xf32>
    %345 = arith.addf %343, %344 : vector<17x32xf32>
    %346 = arith.addf %276, %345 : vector<17x32xf32>
    %347 = tpu.concatenate %346, %0 in 1 : vector<17x32xf32>, vector<17x96xf32> -> vector<17x128xf32>
    %c2_123 = arith.constant 2 : index
    %c0_124 = arith.constant 0 : index
    %c0_125 = arith.constant 0 : index
    %c0_126 = arith.constant 0 : index
    %348 = vector.load %arg4[%c2_123, %c0_124, %c0_125, %c0_126] : memref<3x1x17x128xf32, #tpu.memory_space<vmem>>, vector<1x1x17x128xf32>
    %349 = vector.shape_cast %348 : vector<1x1x17x128xf32> to vector<17x128xf32>
    %350 = vector.shape_cast %347 : vector<17x128xf32> to vector<1x1x17x128xf32>
    tpu.vector_store %arg4[%c2_123, %c0_124, %c0_125, %c0_126], %350 {strides = array<i32>} : memref<3x1x17x128xf32, #tpu.memory_space<vmem>>, vector<1x1x17x128xf32>,
    return
  }
  func.func @transform_0(%arg0: i32) -> (i32, i32, i32) {
    %c0_i32 = arith.constant 0 : i32
    %c0_i32_0 = arith.constant 0 : i32
    %c0_i32_1 = arith.constant 0 : i32
    return %arg0, %c0_i32, %c0_i32_0 : i32, i32, i32
  }
  func.func @transform_1(%arg0: i32) -> (i32, i32) {
    %c0_i32 = arith.constant 0 : i32
    %c0_i32_0 = arith.constant 0 : i32
    %c0_i32_1 = arith.constant 0 : i32
    return %c0_i32, %c0_i32_0 : i32, i32
  }
  func.func @transform_2(%arg0: i32) -> (i32, i32) {
    %c0_i32 = arith.constant 0 : i32
    %c0_i32_0 = arith.constant 0 : i32
    %c0_i32_1 = arith.constant 0 : i32
    return %c0_i32, %c0_i32_0 : i32, i32
  }
  func.func @transform_3(%arg0: i32) -> (i32, i32, i32, i32) {
    %c0_i32 = arith.constant 0 : i32
    %c0_i32_0 = arith.constant 0 : i32
    %c0_i32_1 = arith.constant 0 : i32
    %c0_i32_2 = arith.constant 0 : i32
    return %c0_i32, %arg0, %c0_i32_0, %c0_i32_1 : i32, i32, i32, i32
  }
}

</mosaic_0001>

<llo_original>
// kernel: _lambda_.1
$region0: #{_lambda_.1}
  #allocation0 [shape = 'u32[]', space=smem, size = 0x4, offset = 0x4, fixed_abs, tag = 'smem constant byte address 0x4 - core index']
  #allocation1 [shape = 'u32[72,128]{1,0:T(1,128)}', space=vmem, size = 0x9000, scoped, tag = 'internal scratch']
  %s0 = inlined_call_operand.vmem [shape: bf16[2,17,64], index: 0, kind: input, shape index: {}]
  %s1 = inlined_call_operand.vmem [shape: bf16[512,128], index: 1, kind: input, shape index: {}]
  %s2 = inlined_call_operand.vmem [shape: f32[33,128], index: 2, kind: input, shape index: {}]
  %s3 = inlined_call_operand.vmem [shape: f32[3,2,17,128], index: 3, kind: output, shape index: {}]
  %s4 = sld [smem:[#allocation0]]
  $region79: #{_lambda_.1} parent=0
    _
  %s6 = ssub.s32 1, %s4
  %s7 = scalar_select 0, %s6, %s4
  $region1: #{_lambda_.1} parent=0
    #allocation2 [shape = 'u8[73728]{0}', space=vmem, size = 0x12000, scoped, tag = 'output window, operand 0']
    loop: start=0, step=1, limit=4
    $region2: #{_lambda_.1} parent=1 // loop_pre_header
      _
    $region3: #{_lambda_.1} parent=1 // loop_header
      %s9 = sphi 0, %s13
      %p10 = scmp.ge.s32.totalorder %s9, 4
      %s19 = sphi 0, %s21
      %s22 = sphi 0, %s19
      %s23 = sphi 0, %s22
      %s39 = sphi 0, %s23
      %s43 = sphi 0, %s43
      %s45 = sphi 0, %s43
      %s46 = sphi 0, %s45
      %s60 = sphi 0, %s46
      %s64 = sphi 0, %s64
      %s66 = sphi 0, %s64
      %s67 = sphi 0, %s66
      %s81 = sphi 0, %s67
      %s87 = sphi 0, %s89
      %s90 = sphi 0, %s87
      %s91 = sphi 0, %s90
      %s107 = sphi 0, %s91
    $region4: #{_lambda_.1} parent=1 // loop_header_branch
      %12 = sbr.rel (%p10) target = $region8
    $region5: #{_lambda_.1} parent=1 // loop_body
      %s14 = ssub.s32 %s9, 1
      %s15 = ssub.s32 %s9, 2
      %s16 = sadd.s32 %s9, 1
      %s17 = ssub.s32 %s9, %s16
      %p18 = scmp.eq.s32.totalorder %s17, 0
      %s20 = sadd.s32 %s19, 1
      %s21 = scalar_select %p18, %s19, %s20
      %p24 = pneg %p18
      %p25 = scmp.eq.s32.totalorder %s9, 1
      %p26 = por %p24, %p25
      %p27 = scmp.ne.s32.totalorder %s19, %s22
      %p28 = scmp.eq.s32.totalorder %s9, 0
      %p29 = por %p27, %p28
      %p30 = scmp.ne.s32.totalorder %s19, %s22
      %p31 = scmp.eq.s32.totalorder %s14, 1
      %p32 = por %p30, %p31
      %p33 = scmp.ne.s32.totalorder %s22, %s23
      %p34 = scmp.eq.s32.totalorder %s14, 0
      %p35 = por %p33, %p34
      %p36 = scmp.ne.s32.totalorder %s22, %s23
      %p37 = scmp.eq.s32.totalorder %s15, 1
      %p38 = por %p36, %p37
      %p40 = scmp.ne.s32.totalorder %s23, %s39
      %p41 = scmp.eq.s32.totalorder %s15, 0
      %p42 = por %p40, %p41
      %s44 = sadd.s32 %s43, 1
      %p47 = scmp.eq.s32.totalorder %s9, 1
      %p48 = scmp.ne.s32.totalorder %s43, %s45
      %p49 = scmp.eq.s32.totalorder %s9, 0
      %p50 = por %p48, %p49
      %p51 = scmp.ne.s32.totalorder %s43, %s45
      %p52 = scmp.eq.s32.totalorder %s14, 1
      %p53 = por %p51, %p52
      %p54 = scmp.ne.s32.totalorder %s45, %s46
      %p55 = scmp.eq.s32.totalorder %s14, 0
      %p56 = por %p54, %p55
      %p57 = scmp.ne.s32.totalorder %s45, %s46
      %p58 = scmp.eq.s32.totalorder %s15, 1
      %p59 = por %p57, %p58
      %p61 = scmp.ne.s32.totalorder %s46, %s60
      %p62 = scmp.eq.s32.totalorder %s15, 0
      %p63 = por %p61, %p62
      %s65 = sadd.s32 %s64, 1
      %p68 = scmp.eq.s32.totalorder %s9, 1
      %p69 = scmp.ne.s32.totalorder %s64, %s66
      %p70 = scmp.eq.s32.totalorder %s9, 0
      %p71 = por %p69, %p70
      %p72 = scmp.ne.s32.totalorder %s64, %s66
      %p73 = scmp.eq.s32.totalorder %s14, 1
      %p74 = por %p72, %p73
      %p75 = scmp.ne.s32.totalorder %s66, %s67
      %p76 = scmp.eq.s32.totalorder %s14, 0
      %p77 = por %p75, %p76
      %p78 = scmp.ne.s32.totalorder %s66, %s67
      %p79 = scmp.eq.s32.totalorder %s15, 1
      %p80 = por %p78, %p79
      %p82 = scmp.ne.s32.totalorder %s67, %s81
      %p83 = scmp.eq.s32.totalorder %s15, 0
      %p84 = por %p82, %p83
      %s85 = ssub.s32 %s9, %s16
      %p86 = scmp.eq.s32.totalorder %s85, 0
      %s88 = sadd.s32 %s87, 1
      %s89 = scalar_select %p86, %s87, %s88
      %p92 = pneg %p86
      %p93 = scmp.eq.s32.totalorder %s9, 1
      %p94 = por %p92, %p93
      %p95 = scmp.ne.s32.totalorder %s87, %s90
      %p96 = scmp.eq.s32.totalorder %s9, 0
      %p97 = por %p95, %p96
      %p98 = scmp.ne.s32.totalorder %s87, %s90
      %p99 = scmp.eq.s32.totalorder %s14, 1
      %p100 = por %p98, %p99
      %p101 = scmp.ne.s32.totalorder %s90, %s91
      %p102 = scmp.eq.s32.totalorder %s14, 0
      %p103 = por %p101, %p102
      %p104 = scmp.ne.s32.totalorder %s90, %s91
      %p105 = scmp.eq.s32.totalorder %s15, 1
      %p106 = por %p104, %p105
      %p108 = scmp.ne.s32.totalorder %s91, %s107
      %p109 = scmp.eq.s32.totalorder %s15, 0
      %p110 = por %p108, %p109
      %p111 = scmp.le.s32.totalorder 1, %s9
      %p112 = scmp.lt.s32.totalorder %s9, 3
      %p113 = pnand %p111, %p112
      %p114 = pneg %p113
      // Predicated region
      $region9: #{_lambda_.1} parent=5 // pred_check
        _
      $region10: #{_lambda_.1} parent=5 // pred_check_branch
        %116 = sbr.rel (%p113) target = $region12
      $region11: #{_lambda_.1} parent=5 // pred_region
        %s117 = ssub.s32 %s9, 1
        // Predicated region
        $region13: #{_lambda_.1} parent=11 // pred_check
          %p118 = pneg %p56
        $region14: #{_lambda_.1} parent=11 // pred_check_branch
          %120 = sbr.rel (%p118) target = $region16
        $region15: #{_lambda_.1} parent=11 // pred_region
          _
        $region16: #{_lambda_.1} parent=11 // pred_fallthru
          _
        // Predicated region
        $region17: #{_lambda_.1} parent=11 // pred_check
          %p121 = pneg %p77
        $region18: #{_lambda_.1} parent=11 // pred_check_branch
          %123 = sbr.rel (%p121) target = $region20
        $region19: #{_lambda_.1} parent=11 // pred_region
          _
        $region20: #{_lambda_.1} parent=11 // pred_fallthru
          _
      $region12: #{_lambda_.1} parent=5 // pred_fallthru
        _
      %p124 = scmp.lt.s32.totalorder %s9, 2
      // Predicated region
      $region21: #{_lambda_.1} parent=5 // pred_check
        %p125 = pneg %p124
      $region22: #{_lambda_.1} parent=5 // pred_check_branch
        %127 = sbr.rel (%p125) target = $region24
      $region23: #{_lambda_.1} parent=5 // pred_region
        // Predicated region
        $region25: #{_lambda_.1} parent=23 // pred_check
          %p128 = pneg %p29
        $region26: #{_lambda_.1} parent=23 // pred_check_branch
          %130 = sbr.rel (%p128) target = $region28
        $region27: #{_lambda_.1} parent=23 // pred_region
          %p131 = scmp.lt.s32.totalorder %s9, 1
          %s132 = scalar_select %p131, %s9, 1
          %s133 = smul.addr %s132, 3
          %s134 = smul.addr %s133, 4
          %s135 = scalar_lea.vmem %s0, %s134
        $region28: #{_lambda_.1} parent=23 // pred_fallthru
          _
      $region24: #{_lambda_.1} parent=5 // pred_fallthru
        _
      %p136 = scmp.le.s32.totalorder 1, %s9
      %p137 = scmp.lt.s32.totalorder %s9, 3
      %p138 = pnand %p136, %p137
      %p139 = pneg %p138
      // Predicated region
      $region29: #{_lambda_.1} parent=5 // pred_check
        _
      $region30: #{_lambda_.1} parent=5 // pred_check_branch
        %141 = sbr.rel (%p138) target = $region32
      $region31: #{_lambda_.1} parent=5 // pred_region
        %s142 = ssub.s32 %s9, 1
        %p143 = scmp.lt.s32.totalorder %s14, 1
        %s144 = scalar_select %p143, %s14, 1
        %s145 = smul.addr %s144, 3
        %s146 = smul.addr %s145, 4
        %s147 = scalar_lea.vmem %s0, %s146
        %p148 = pneg %p35
        %p149 = pneg %p32
        %p150 = pneg %p56
        %p151 = pneg %p53
        %p152 = pneg %p77
        %p153 = pneg %p74
        %p154 = pneg %p103
        %p155 = pneg %p100
        %s156 = sand.u32 %s90, 1
        %s157 = sand.u32 %s90, 1
        %s158 = smul.addr %s157, 72
        %s159 = scalar_lea.vmem [#allocation2], %s158
        %p160 = scmp.lt.s32.totalorder %s14, 1
        %s161 = scalar_select %p160, %s14, 1
        %s162 = smul.addr %s161, 3
        %s163 = smul.addr %s162, 4
        %s164 = scalar_lea.vmem %s0, %s163
        %v166 = vld [vmem:[%s164] sm:$0xf]
        %v167 = vld [vmem:[%s164 + $0x4] sm:$0xf]
        %v168 = vld [vmem:[%s164 + $0x8] sm:$0x1]
        %v169 = vld [vmem:[%s1] sm:$0xf]
        %v170 = vld [vmem:[%s1 + $0x4] sm:$0xf]
        %v171 = vld [vmem:[%s1 + $0x8] sm:$0xf]
        %v172 = vld [vmem:[%s1 + $0xc] sm:$0xf]
        %v173 = vld [vmem:[%s1 + $0x10] sm:$0xf]
        %v174 = vld [vmem:[%s1 + $0x14] sm:$0xf]
        %v175 = vld [vmem:[%s1 + $0x18] sm:$0xf]
        %v176 = vld [vmem:[%s1 + $0x1c] sm:$0xf]
        %v177 = vld [vmem:[%s2 + $0x10] sm:$0xff]
        %v178 = vld [vmem:[%s2 + $0x18] sm:$0xff]
        %v179 = vld [vmem:[%s2 + $0x20] sm:$0x1]
        %v183 = vunpack.c.l.b16 %v166
        %v184 = vunpack.c.l.b16 %v167
        %v185 = vunpack.c.l.b16 %v168
        %v186 = vpack.c.b16 %v184, %v183
        %v187 = vpack.c.b16 %v185, %v185
        %v196 = vunpack.c.l.b16 %v169
        %v197 = vunpack.c.l.b16 %v170
        %v198 = vunpack.c.l.b16 %v171
        %v199 = vunpack.c.l.b16 %v172
        %v200 = vunpack.c.l.b16 %v173
        %v201 = vunpack.c.l.b16 %v174
        %v202 = vunpack.c.l.b16 %v175
        %v203 = vunpack.c.l.b16 %v176
        %v204 = vpack.c.b16 %v197, %v196
        %v205 = vpack.c.b16 %v199, %v198
        %v206 = vpack.c.b16 %v201, %v200
        %v207 = vpack.c.b16 %v203, %v202
        %vm212 = vcmask 523264
        %v214 = vsel %vm212, %v186, 0
        %v217 = vsel %vm212, %v187, 0
        %219 = vmatpush.bf16.msra.mxu0 0
        %220 = vmatpush.bf16.msra.mxu0 0
        %221 = vmatpush.bf16.msra.mxu0 0
        %222 = vmatpush.bf16.msra.mxu0 0
        %223 = vmatpush.bf16.msra.mxu0 %v207
        %224 = vmatpush.bf16.msra.mxu0 %v206
        %225 = vmatpush.bf16.msra.mxu0 %v205
        %226 = vmatpush.bf16.msra.mxu0 %v204
        %227 = vmatmul.bf16.gmra.mxu0 %v214
        %v228 = vpop.f32.mrf.mxu0
        %v229 = vadd.f32 %v177, %v228
        %v230 = vpop.f32.mrf.mxu0
        %v231 = vadd.f32 %v178, %v230
        %232 = vmatmul.bf16.gmra.mxu0 %v217
        %v233 = vpop.f32.mrf.mxu0
        %v234 = vadd.f32 %v179, %v233
        %v235 = vpop.f32.mrf.mxu0
        %236 = vdwg.mxu0
        %vm237 = vcmask 261120
        %v238 = vsel %vm237, %v229, 0.0
        %v239 = vsel %vm237, %v231, 0.0
        %v240 = vsel %vm237, %v234, 0.0
        %241 = vst [vmem:[%s159] sm:$0xff] %v238
        %242 = vst [vmem:[%s159 + $0x8] sm:$0xff] %v239
        %243 = vst [vmem:[%s159 + $0x10] sm:$0x1] %v240
        %v244 = vld [vmem:[%s1 + $0x20] sm:$0xf]
        %v245 = vld [vmem:[%s1 + $0x24] sm:$0xf]
        %v246 = vld [vmem:[%s1 + $0x28] sm:$0xf]
        %v247 = vld [vmem:[%s1 + $0x2c] sm:$0xf]
        %v248 = vld [vmem:[%s1 + $0x30] sm:$0xf]
        %v249 = vld [vmem:[%s1 + $0x34] sm:$0xf]
        %v250 = vld [vmem:[%s1 + $0x38] sm:$0xf]
        %v251 = vld [vmem:[%s1 + $0x3c] sm:$0xf]
        %v252 = vld [vmem:[%s1 + $0x40] sm:$0xf]
        %v253 = vld [vmem:[%s1 + $0x44] sm:$0xf]
        %v254 = vld [vmem:[%s1 + $0x48] sm:$0xf]
        %v255 = vld [vmem:[%s1 + $0x4c] sm:$0xf]
        %v256 = vld [vmem:[%s1 + $0x50] sm:$0xf]
        %v257 = vld [vmem:[%s1 + $0x54] sm:$0xf]
        %v258 = vld [vmem:[%s1 + $0x58] sm:$0xf]
        %v259 = vld [vmem:[%s1 + $0x5c] sm:$0xf]
        %v260 = vld [vmem:[%s1 + $0x60] sm:$0xf]
        %v261 = vld [vmem:[%s1 + $0x64] sm:$0xf]
        %v262 = vld [vmem:[%s1 + $0x68] sm:$0xf]
        %v263 = vld [vmem:[%s1 + $0x6c] sm:$0xf]
        %v264 = vld [vmem:[%s1 + $0x70] sm:$0xf]
        %v265 = vld [vmem:[%s1 + $0x74] sm:$0xf]
        %v266 = vld [vmem:[%s1 + $0x78] sm:$0xf]
        %v267 = vld [vmem:[%s1 + $0x7c] sm:$0xf]
        %v268 = vld [vmem:[%s1 + $0x80] sm:$0xf]
        %v269 = vld [vmem:[%s1 + $0x84] sm:$0xf]
        %v270 = vld [vmem:[%s1 + $0x88] sm:$0xf]
        %v271 = vld [vmem:[%s1 + $0x8c] sm:$0xf]
        %v272 = vld [vmem:[%s2] sm:$0x1]
        %v273 = vld [vmem:[%s2 + $0x1] sm:$0x1]
        %v274 = vld [vmem:[%s2 + $0x2] sm:$0x1]
        %v275 = vld [vmem:[%s2 + $0x3] sm:$0x1]
        %v276 = vld [vmem:[%s2 + $0x4] sm:$0x1]
        %v277 = vld [vmem:[%s2 + $0x5] sm:$0x1]
        %v278 = vld [vmem:[%s2 + $0x6] sm:$0x1]
        %v279 = vld [vmem:[%s2 + $0x7] sm:$0x1]
        %280 = vadd.xlane.f32.xlu0 %v238
        %v281 = vpop.xlane.xlu0 %280
        %282 = vadd.xlane.f32.xlu0 %v239
        %v283 = vpop.xlane.xlu0 %282
        %vm284 = vcmask 253952
        %v285 = vsel %vm284, %v234, 0.0
        %286 = vadd.xlane.f32.xlu0 %v285
        %v287 = vpop.xlane.xlu0 %286
        %v288 = vrcp.pop 32.0
        %v289 = vmul.f32 32.0, %v288
        %v290 = vsub.f32 1.0, %v289
        %v291 = vmul.f32 %v288, %v290
        %v292 = vadd.f32 %v288, %v291
        %vm293 = vweird.f32 %v288
        %v294 = vsel %vm293, %v288, %v292
        %v295 = vmul.f32 %v281, %v294
        %v296 = vmul.f32 %v283, %v294
        %v297 = vmul.f32 %v287, %v294
        %v298 = vsub.f32 %v229, %v295
        %v299 = vsub.f32 %v231, %v296
        %v300 = vsub.f32 %v234, %v297
        %v301 = vmul.f32 %v298, %v298
        %v302 = vmul.f32 %v299, %v299
        %v303 = vmul.f32 %v300, %v300
        %v304 = vsel %vm237, %v301, 0.0
        %305 = vadd.xlane.f32.xlu0 %v304
        %v306 = vpop.xlane.xlu0 %305
        %v307 = vsel %vm237, %v302, 0.0
        %308 = vadd.xlane.f32.xlu0 %v307
        %v309 = vpop.xlane.xlu0 %308
        %v310 = vsel %vm284, %v303, 0.0
        %311 = vadd.xlane.f32.xlu0 %v310
        %v312 = vpop.xlane.xlu0 %311
        %v313 = vmul.f32 %v306, %v294
        %v314 = vmul.f32 %v309, %v294
        %v315 = vmul.f32 %v312, %v294
        %v316 = vadd.f32 %v313, 1e-05
        %v317 = vadd.f32 %v314, 1e-05
        %v318 = vadd.f32 %v315, 1e-05
        %v319 = vrsqrt.pop %v316
        %v320 = vmul.f32 %v319, %v316
        %v321 = vmul.f32 %v320, %v319
        %v322 = vmul.f32 0.5, %v321
        %v323 = vsub.f32 1.5, %v322
        %v324 = vmul.f32 %v319, %v323
        %vm325 = vweird.f32 %v316
        %vm326 = vweird.f32 %v319
        %vm327 = vmor %vm325, %vm326
        %v328 = vsel %vm327, %v319, %v324
        %v329 = vrsqrt.pop %v317
        %v330 = vmul.f32 %v329, %v317
        %v331 = vmul.f32 %v330, %v329
        %v332 = vmul.f32 0.5, %v331
        %v333 = vsub.f32 1.5, %v332
        %v334 = vmul.f32 %v329, %v333
        %vm335 = vweird.f32 %v317
        %vm336 = vweird.f32 %v329
        %vm337 = vmor %vm335, %vm336
        %v338 = vsel %vm337, %v329, %v334
        %v339 = vrsqrt.pop %v318
        %v340 = vmul.f32 %v339, %v318
        %v341 = vmul.f32 %v340, %v339
        %v342 = vmul.f32 0.5, %v341
        %v343 = vsub.f32 1.5, %v342
        %v344 = vmul.f32 %v339, %v343
        %vm345 = vweird.f32 %v318
        %vm346 = vweird.f32 %v339
        %vm347 = vmor %vm345, %vm346
        %v348 = vsel %vm347, %v339, %v344
        %v349 = vmul.f32 %v298, %v328
        %v350 = vmul.f32 %v299, %v338
        %v351 = vmul.f32 %v300, %v348
        %v352 = vperm.slane %v272, 0
        %v353 = vmul.f32 %v349, %v352
        %v354 = vmul.f32 %v350, %v352
        %v355 = vmul.f32 %v351, %v352
        %v356 = vperm.slane %v273, 0
        %v357 = vadd.f32 %v353, %v356
        %v358 = vadd.f32 %v354, %v356
        %v359 = vadd.f32 %v355, %v356
        %v360 = vpack.c.bf16 %v358, %v357
        %v361 = vpack.c.bf16 %v359, %v359
        %v362 = vperm.slane %v274, 0
        %v367 = vunpack.c.l.b16 %v244
        %v368 = vunpack.c.l.b16 %v245
        %v369 = vunpack.c.l.b16 %v246
        %v370 = vunpack.c.l.b16 %v247
        %v371 = vpack.c.b16 %v368, %v367
        %v372 = vpack.c.b16 %v370, %v369
        %v376 = vsel %vm237, %v360, 0
        %v379 = vsel %vm237, %v361, 0
        %381 = vmatpush.bf16.msra.mxu0 0
        %382 = vmatpush.bf16.msra.mxu0 0
        %383 = vmatpush.bf16.msra.mxu0 0
        %384 = vmatpush.bf16.msra.mxu0 0
        %385 = vmatpush.bf16.msra.mxu0 0
        %386 = vmatpush.bf16.msra.mxu0 0
        %387 = vmatpush.bf16.msra.mxu0 %v372
        %388 = vmatpush.bf16.msra.mxu0 %v371
        %389 = vmatmul.bf16.gmra.mxu0 %v376
        %v390 = vpop.f32.mrf.mxu0
        %v391 = vadd.f32 %v362, %v390
        %v392 = vpop.f32.mrf.mxu0
        %v393 = vadd.f32 %v362, %v392
        %394 = vmatmul.bf16.gmra.mxu0 %v379
        %v395 = vpop.f32.mrf.mxu0
        %v396 = vadd.f32 %v362, %v395
        %v397 = vpop.f32.mrf.mxu0
        %398 = vdwg.mxu0
        %v399 = vpack.c.bf16 %v391, %v391
        %v400 = vpack.c.bf16 %v393, %v393
        %v401 = vpack.c.bf16 %v396, %v396
        %v405 = vunpack.c.l.b16 %v399
        %v406 = vunpack.c.l.b16 %v400
        %v407 = vunpack.c.l.b16 %v401
        %v408 = vpack.c.b16 %v406, %v405
        %v409 = vpack.c.b16 %v407, %v407
        %410 = vrot.lane.b32.xlu0 %v408, 96
        %v411 = vpop.permute.xlu0 %410
        %412 = vrot.lane.b32.xlu0 %v409, 96
        %v413 = vpop.permute.xlu0 %412
        %vm414 = vcmask 64512
        %v416 = vsel %vm414, %v408, 0
        %v419 = vsel %vm414, %v409, 0
        %v422 = vsel %vm414, %v411, 0
        %v425 = vsel %vm414, %v413, 0
        %427 = vmatpush.bf16.xpose.msra.mxu0 0
        %428 = vmatpush.bf16.xpose.msra.mxu0 0
        %429 = vmatpush.bf16.xpose.msra.mxu0 0
        %430 = vmatpush.bf16.xpose.msra.mxu0 0
        %431 = vmatpush.bf16.xpose.msra.mxu0 0
        %432 = vmatpush.bf16.xpose.msra.mxu0 0
        %433 = vmatpush.bf16.xpose.msra.mxu0 %v425
        %434 = vmatpush.bf16.xpose.msra.mxu0 %v422
        %435 = vmatmul.bf16.gmra.mxu0 %v416
        %v436 = vpop.f32.mrf.mxu0
        %v437 = vadd.f32 0.0, %v436
        %v438 = vpop.f32.mrf.mxu0
        %v439 = vadd.f32 0.0, %v438
        %440 = vmatmul.bf16.gmra.mxu0 %v419
        %v441 = vpop.f32.mrf.mxu0
        %v442 = vadd.f32 0.0, %v441
        %v443 = vpop.f32.mrf.mxu0
        %444 = vdwg.mxu0
        %vm445 = vcmask 138240
        %v446 = vsel %vm445, %v437, -inf
        %447 = vmax.xlane.f32.xlu0 %v446
        %v448 = vpop.xlane.xlu0 %447
        %v449 = vsel %vm445, %v439, -inf
        %450 = vmax.xlane.f32.xlu0 %v449
        %v451 = vpop.xlane.xlu0 %450
        %vm452 = vcmask 131072
        %v453 = vsel %vm452, %v442, -inf
        %454 = vmax.xlane.f32.xlu0 %v453
        %v455 = vpop.xlane.xlu0 %454
        %v456 = vsub.f32 %v437, %v448
        %v457 = vsub.f32 %v439, %v451
        %v458 = vsub.f32 %v442, %v455
        %v459 = vmul.f32 %v456, 1.442695
        %v460 = vpow.pop %v459
        %v461 = vmul.f32 %v457, 1.442695
        %v462 = vpow.pop %v461
        %v463 = vmul.f32 %v458, 1.442695
        %v464 = vpow.pop %v463
        %v465 = vsel %vm445, %v460, 0.0
        %466 = vadd.xlane.f32.xlu0 %v465
        %v467 = vpop.xlane.xlu0 %466
        %v468 = vsel %vm445, %v462, 0.0
        %469 = vadd.xlane.f32.xlu0 %v468
        %v470 = vpop.xlane.xlu0 %469
        %v471 = vsel %vm452, %v464, 0.0
        %472 = vadd.xlane.f32.xlu0 %v471
        %v473 = vpop.xlane.xlu0 %472
        %v474 = vrcp.pop %v467
        %v475 = vrcp.pop %v470
        %v476 = vrcp.pop %v473
        %v477 = vmul.f32 %v460, %v474
        %v478 = vmul.f32 %v462, %v475
        %v479 = vmul.f32 %v464, %v476
        %v480 = vpack.c.bf16 %v478, %v477
        %v481 = vpack.c.bf16 %v479, %v479
        %482 = vrot.lane.b32.xlu0 %v408, 64
        %v483 = vpop.permute.xlu0 %482
        %484 = vrot.lane.b32.xlu0 %v409, 64
        %v485 = vpop.permute.xlu0 %484
        %v488 = vsel %vm445, %v480, 0
        %v491 = vsel %vm445, %v481, 0
        %vm493 = vcmask 1040384
        %v494 = vsel 0, 4294967295, 65535
        %v495 = vsel %vm493, %v494, 0
        %v497 = vand.u32 %v485, %v495
        %499 = vmatpush.bf16.msra.mxu0 0
        %500 = vmatpush.bf16.msra.mxu0 0
        %501 = vmatpush.bf16.msra.mxu0 0
        %502 = vmatpush.bf16.msra.mxu0 0
        %503 = vmatpush.bf16.msra.mxu0 0
        %504 = vmatpush.bf16.msra.mxu0 0
        %505 = vmatpush.bf16.msra.mxu0 %v497
        %506 = vmatpush.bf16.msra.mxu0 %v483
        %507 = vmatmul.bf16.gmra.mxu0 %v488
        %v508 = vpop.f32.mrf.mxu0
        %v509 = vadd.f32 0.0, %v508
        %v510 = vpop.f32.mrf.mxu0
        %v511 = vadd.f32 0.0, %v510
        %512 = vmatmul.bf16.gmra.mxu0 %v491
        %v513 = vpop.f32.mrf.mxu0
        %v514 = vadd.f32 0.0, %v513
        %v515 = vpop.f32.mrf.mxu0
        %516 = vdwg.mxu0
        %517 = vrot.lane.b32.xlu0 %v408, 120
        %v518 = vpop.permute.xlu0 %517
        %519 = vrot.lane.b32.xlu0 %v409, 120
        %v520 = vpop.permute.xlu0 %519
        %521 = vrot.lane.b32.xlu0 %v408, 88
        %v522 = vpop.permute.xlu0 %521
        %523 = vrot.lane.b32.xlu0 %v409, 88
        %v524 = vpop.permute.xlu0 %523
        %v526 = vsel %vm414, %v518, 0
        %v529 = vsel %vm414, %v520, 0
        %v532 = vsel %vm414, %v522, 0
        %v535 = vsel %vm414, %v524, 0
        %537 = vmatpush.bf16.xpose.msra.mxu0 0
        %538 = vmatpush.bf16.xpose.msra.mxu0 0
        %539 = vmatpush.bf16.xpose.msra.mxu0 0
        %540 = vmatpush.bf16.xpose.msra.mxu0 0
        %541 = vmatpush.bf16.xpose.msra.mxu0 0
        %542 = vmatpush.bf16.xpose.msra.mxu0 0
        %543 = vmatpush.bf16.xpose.msra.mxu0 %v535
        %544 = vmatpush.bf16.xpose.msra.mxu0 %v532
        %545 = vmatmul.bf16.gmra.mxu0 %v526
        %v546 = vpop.f32.mrf.mxu0
        %v547 = vadd.f32 0.0, %v546
        %v548 = vpop.f32.mrf.mxu0
        %v549 = vadd.f32 0.0, %v548
        %550 = vmatmul.bf16.gmra.mxu0 %v529
        %v551 = vpop.f32.mrf.mxu0
        %v552 = vadd.f32 0.0, %v551
        %v553 = vpop.f32.mrf.mxu0
        %554 = vdwg.mxu0
        %v555 = vsel %vm445, %v547, -inf
        %556 = vmax.xlane.f32.xlu0 %v555
        %v557 = vpop.xlane.xlu0 %556
        %v558 = vsel %vm445, %v549, -inf
        %559 = vmax.xlane.f32.xlu0 %v558
        %v560 = vpop.xlane.xlu0 %559
        %v561 = vsel %vm452, %v552, -inf
        %562 = vmax.xlane.f32.xlu0 %v561
        %v563 = vpop.xlane.xlu0 %562
        %v564 = vsub.f32 %v547, %v557
        %v565 = vsub.f32 %v549, %v560
        %v566 = vsub.f32 %v552, %v563
        %v567 = vmul.f32 %v564, 1.442695
        %v568 = vpow.pop %v567
        %v569 = vmul.f32 %v565, 1.442695
        %v570 = vpow.pop %v569
        %v571 = vmul.f32 %v566, 1.442695
        %v572 = vpow.pop %v571
        %v573 = vsel %vm445, %v568, 0.0
        %574 = vadd.xlane.f32.xlu0 %v573
        %v575 = vpop.xlane.xlu0 %574
        %v576 = vsel %vm445, %v570, 0.0
        %577 = vadd.xlane.f32.xlu0 %v576
        %v578 = vpop.xlane.xlu0 %577
        %v579 = vsel %vm452, %v572, 0.0
        %580 = vadd.xlane.f32.xlu0 %v579
        %v581 = vpop.xlane.xlu0 %580
        %v582 = vrcp.pop %v575
        %v583 = vrcp.pop %v578
        %v584 = vrcp.pop %v581
        %v585 = vmul.f32 %v568, %v582
        %v586 = vmul.f32 %v570, %v583
        %v587 = vmul.f32 %v572, %v584
        %v588 = vpack.c.bf16 %v586, %v585
        %v589 = vpack.c.bf16 %v587, %v587
        %590 = vrot.lane.b32.xlu0 %v408, 56
        %v591 = vpop.permute.xlu0 %590
        %592 = vrot.lane.b32.xlu0 %v409, 56
        %v593 = vpop.permute.xlu0 %592
        %v596 = vsel %vm445, %v588, 0
        %v599 = vsel %vm445, %v589, 0
        %v602 = vand.u32 %v593, %v495
        %604 = vmatpush.bf16.msra.mxu0 0
        %605 = vmatpush.bf16.msra.mxu0 0
        %606 = vmatpush.bf16.msra.mxu0 0
        %607 = vmatpush.bf16.msra.mxu0 0
        %608 = vmatpush.bf16.msra.mxu0 0
        %609 = vmatpush.bf16.msra.mxu0 0
        %610 = vmatpush.bf16.msra.mxu0 %v602
        %611 = vmatpush.bf16.msra.mxu0 %v591
        %612 = vmatmul.bf16.gmra.mxu0 %v596
        %v613 = vpop.f32.mrf.mxu0
        %v614 = vadd.f32 0.0, %v613
        %v615 = vpop.f32.mrf.mxu0
        %v616 = vadd.f32 0.0, %v615
        %617 = vmatmul.bf16.gmra.mxu0 %v599
        %v618 = vpop.f32.mrf.mxu0
        %v619 = vadd.f32 0.0, %v618
        %v620 = vpop.f32.mrf.mxu0
        %621 = vdwg.mxu0
        %622 = vrot.lane.b32.xlu0 %v408, 112
        %v623 = vpop.permute.xlu0 %622
        %624 = vrot.lane.b32.xlu0 %v409, 112
        %v625 = vpop.permute.xlu0 %624
        %626 = vrot.lane.b32.xlu0 %v408, 80
        %v627 = vpop.permute.xlu0 %626
        %628 = vrot.lane.b32.xlu0 %v409, 80
        %v629 = vpop.permute.xlu0 %628
        %v631 = vsel %vm414, %v623, 0
        %v634 = vsel %vm414, %v625, 0
        %v637 = vsel %vm414, %v627, 0
        %v640 = vsel %vm414, %v629, 0
        %642 = vmatpush.bf16.xpose.msra.mxu0 0
        %643 = vmatpush.bf16.xpose.msra.mxu0 0
        %644 = vmatpush.bf16.xpose.msra.mxu0 0
        %645 = vmatpush.bf16.xpose.msra.mxu0 0
        %646 = vmatpush.bf16.xpose.msra.mxu0 0
        %647 = vmatpush.bf16.xpose.msra.mxu0 0
        %648 = vmatpush.bf16.xpose.msra.mxu0 %v640
        %649 = vmatpush.bf16.xpose.msra.mxu0 %v637
        %650 = vmatmul.bf16.gmra.mxu0 %v631
        %v651 = vpop.f32.mrf.mxu0
        %v652 = vadd.f32 0.0, %v651
        %v653 = vpop.f32.mrf.mxu0
        %v654 = vadd.f32 0.0, %v653
        %655 = vmatmul.bf16.gmra.mxu0 %v634
        %v656 = vpop.f32.mrf.mxu0
        %v657 = vadd.f32 0.0, %v656
        %v658 = vpop.f32.mrf.mxu0
        %659 = vdwg.mxu0
        %v660 = vsel %vm445, %v652, -inf
        %661 = vmax.xlane.f32.xlu0 %v660
        %v662 = vpop.xlane.xlu0 %661
        %v663 = vsel %vm445, %v654, -inf
        %664 = vmax.xlane.f32.xlu0 %v663
        %v665 = vpop.xlane.xlu0 %664
        %v666 = vsel %vm452, %v657, -inf
        %667 = vmax.xlane.f32.xlu0 %v666
        %v668 = vpop.xlane.xlu0 %667
        %v669 = vsub.f32 %v652, %v662
        %v670 = vsub.f32 %v654, %v665
        %v671 = vsub.f32 %v657, %v668
        %v672 = vmul.f32 %v669, 1.442695
        %v673 = vpow.pop %v672
        %v674 = vmul.f32 %v670, 1.442695
        %v675 = vpow.pop %v674
        %v676 = vmul.f32 %v671, 1.442695
        %v677 = vpow.pop %v676
        %v678 = vsel %vm445, %v673, 0.0
        %679 = vadd.xlane.f32.xlu0 %v678
        %v680 = vpop.xlane.xlu0 %679
        %v681 = vsel %vm445, %v675, 0.0
        %682 = vadd.xlane.f32.xlu0 %v681
        %v683 = vpop.xlane.xlu0 %682
        %v684 = vsel %vm452, %v677, 0.0
        %685 = vadd.xlane.f32.xlu0 %v684
        %v686 = vpop.xlane.xlu0 %685
        %v687 = vrcp.pop %v680
        %v688 = vrcp.pop %v683
        %v689 = vrcp.pop %v686
        %v690 = vmul.f32 %v673, %v687
        %v691 = vmul.f32 %v675, %v688
        %v692 = vmul.f32 %v677, %v689
        %v693 = vpack.c.bf16 %v691, %v690
        %v694 = vpack.c.bf16 %v692, %v692
        %695 = vrot.lane.b32.xlu0 %v408, 48
        %v696 = vpop.permute.xlu0 %695
        %697 = vrot.lane.b32.xlu0 %v409, 48
        %v698 = vpop.permute.xlu0 %697
        %v701 = vsel %vm445, %v693, 0
        %v704 = vsel %vm445, %v694, 0
        %v707 = vand.u32 %v698, %v495
        %709 = vmatpush.bf16.msra.mxu0 0
        %710 = vmatpush.bf16.msra.mxu0 0
        %711 = vmatpush.bf16.msra.mxu0 0
        %712 = vmatpush.bf16.msra.mxu0 0
        %713 = vmatpush.bf16.msra.mxu0 0
        %714 = vmatpush.bf16.msra.mxu0 0
        %715 = vmatpush.bf16.msra.mxu0 %v707
        %716 = vmatpush.bf16.msra.mxu0 %v696
        %717 = vmatmul.bf16.gmra.mxu0 %v701
        %v718 = vpop.f32.mrf.mxu0
        %v719 = vadd.f32 0.0, %v718
        %v720 = vpop.f32.mrf.mxu0
        %v721 = vadd.f32 0.0, %v720
        %722 = vmatmul.bf16.gmra.mxu0 %v704
        %v723 = vpop.f32.mrf.mxu0
        %v724 = vadd.f32 0.0, %v723
        %v725 = vpop.f32.mrf.mxu0
        %726 = vdwg.mxu0
        %727 = vrot.lane.b32.xlu0 %v408, 104
        %v728 = vpop.permute.xlu0 %727
        %729 = vrot.lane.b32.xlu0 %v409, 104
        %v730 = vpop.permute.xlu0 %729
        %731 = vrot.lane.b32.xlu0 %v408, 72
        %v732 = vpop.permute.xlu0 %731
        %733 = vrot.lane.b32.xlu0 %v409, 72
        %v734 = vpop.permute.xlu0 %733
        %v736 = vsel %vm414, %v728, 0
        %v739 = vsel %vm414, %v730, 0
        %v742 = vsel %vm414, %v732, 0
        %v745 = vsel %vm414, %v734, 0
        %747 = vmatpush.bf16.xpose.msra.mxu0 0
        %748 = vmatpush.bf16.xpose.msra.mxu0 0
        %749 = vmatpush.bf16.xpose.msra.mxu0 0
        %750 = vmatpush.bf16.xpose.msra.mxu0 0
        %751 = vmatpush.bf16.xpose.msra.mxu0 0
        %752 = vmatpush.bf16.xpose.msra.mxu0 0
        %753 = vmatpush.bf16.xpose.msra.mxu0 %v745
        %754 = vmatpush.bf16.xpose.msra.mxu0 %v742
        %755 = vmatmul.bf16.gmra.mxu0 %v736
        %v756 = vpop.f32.mrf.mxu0
        %v757 = vadd.f32 0.0, %v756
        %v758 = vpop.f32.mrf.mxu0
        %v759 = vadd.f32 0.0, %v758
        %760 = vmatmul.bf16.gmra.mxu0 %v739
        %v761 = vpop.f32.mrf.mxu0
        %v762 = vadd.f32 0.0, %v761
        %v763 = vpop.f32.mrf.mxu0
        %764 = vdwg.mxu0
        %v765 = vsel %vm445, %v757, -inf
        %766 = vmax.xlane.f32.xlu0 %v765
        %v767 = vpop.xlane.xlu0 %766
        %v768 = vsel %vm445, %v759, -inf
        %769 = vmax.xlane.f32.xlu0 %v768
        %v770 = vpop.xlane.xlu0 %769
        %v771 = vsel %vm452, %v762, -inf
        %772 = vmax.xlane.f32.xlu0 %v771
        %v773 = vpop.xlane.xlu0 %772
        %v774 = vsub.f32 %v757, %v767
        %v775 = vsub.f32 %v759, %v770
        %v776 = vsub.f32 %v762, %v773
        %v777 = vmul.f32 %v774, 1.442695
        %v778 = vpow.pop %v777
        %v779 = vmul.f32 %v775, 1.442695
        %v780 = vpow.pop %v779
        %v781 = vmul.f32 %v776, 1.442695
        %v782 = vpow.pop %v781
        %v783 = vsel %vm445, %v778, 0.0
        %784 = vadd.xlane.f32.xlu0 %v783
        %v785 = vpop.xlane.xlu0 %784
        %v786 = vsel %vm445, %v780, 0.0
        %787 = vadd.xlane.f32.xlu0 %v786
        %v788 = vpop.xlane.xlu0 %787
        %v789 = vsel %vm452, %v782, 0.0
        %790 = vadd.xlane.f32.xlu0 %v789
        %v791 = vpop.xlane.xlu0 %790
        %v792 = vrcp.pop %v785
        %v793 = vrcp.pop %v788
        %v794 = vrcp.pop %v791
        %v795 = vmul.f32 %v778, %v792
        %v796 = vmul.f32 %v780, %v793
        %v797 = vmul.f32 %v782, %v794
        %v798 = vpack.c.bf16 %v796, %v795
        %v799 = vpack.c.bf16 %v797, %v797
        %800 = vrot.lane.b32.xlu0 %v408, 40
        %v801 = vpop.permute.xlu0 %800
        %802 = vrot.lane.b32.xlu0 %v409, 40
        %v803 = vpop.permute.xlu0 %802
        %v806 = vsel %vm445, %v798, 0
        %v809 = vsel %vm445, %v799, 0
        %v812 = vand.u32 %v803, %v495
        %814 = vmatpush.bf16.msra.mxu0 0
        %815 = vmatpush.bf16.msra.mxu0 0
        %816 = vmatpush.bf16.msra.mxu0 0
        %817 = vmatpush.bf16.msra.mxu0 0
        %818 = vmatpush.bf16.msra.mxu0 0
        %819 = vmatpush.bf16.msra.mxu0 0
        %820 = vmatpush.bf16.msra.mxu0 %v812
        %821 = vmatpush.bf16.msra.mxu0 %v801
        %822 = vmatmul.bf16.gmra.mxu0 %v806
        %v823 = vpop.f32.mrf.mxu0
        %v824 = vadd.f32 0.0, %v823
        %v825 = vpop.f32.mrf.mxu0
        %v826 = vadd.f32 0.0, %v825
        %827 = vmatmul.bf16.gmra.mxu0 %v809
        %v828 = vpop.f32.mrf.mxu0
        %v829 = vadd.f32 0.0, %v828
        %v830 = vpop.f32.mrf.mxu0
        %831 = vdwg.mxu0
        %835 = vrot.lane.b32.xlu0 %v614, 8
        %v836 = vpop.permute.xlu0 %835
        %837 = vrot.lane.b32.xlu0 %v616, 8
        %v838 = vpop.permute.xlu0 %837
        %839 = vrot.lane.b32.xlu0 %v619, 8
        %v840 = vpop.permute.xlu0 %839
        %847 = vrot.lane.b32.xlu0 %v719, 16
        %v848 = vpop.permute.xlu0 %847
        %849 = vrot.lane.b32.xlu0 %v721, 16
        %v850 = vpop.permute.xlu0 %849
        %851 = vrot.lane.b32.xlu0 %v724, 16
        %v852 = vpop.permute.xlu0 %851
        %859 = vrot.lane.b32.xlu0 %v824, 24
        %v860 = vpop.permute.xlu0 %859
        %861 = vrot.lane.b32.xlu0 %v826, 24
        %v862 = vpop.permute.xlu0 %861
        %863 = vrot.lane.b32.xlu0 %v829, 24
        %v864 = vpop.permute.xlu0 %863
        %v868 = vsel %vm414, %v509, %v836
        %v869 = vsel %vm414, %v511, %v838
        %v870 = vsel %vm414, %v514, %v840
        %vm871 = vcmask 130048
        %v872 = vsel %vm871, %v868, %v848
        %v873 = vsel %vm871, %v869, %v850
        %v874 = vsel %vm871, %v870, %v852
        %vm875 = vcmask 195584
        %v876 = vsel %vm875, %v872, %v860
        %v877 = vsel %vm875, %v873, %v862
        %v878 = vsel %vm875, %v874, %v864
        %v879 = vpack.c.bf16 %v877, %v876
        %v880 = vpack.c.bf16 %v878, %v878
        %v885 = vunpack.c.l.b16 %v248
        %v886 = vunpack.c.l.b16 %v249
        %v887 = vunpack.c.l.b16 %v250
        %v888 = vunpack.c.l.b16 %v251
        %v889 = vpack.c.b16 %v886, %v885
        %v890 = vpack.c.b16 %v888, %v887
        %v894 = vsel %vm237, %v879, 0
        %v897 = vsel %vm237, %v880, 0
        %899 = vmatpush.bf16.msra.mxu0 0
        %900 = vmatpush.bf16.msra.mxu0 0
        %901 = vmatpush.bf16.msra.mxu0 0
        %902 = vmatpush.bf16.msra.mxu0 0
        %903 = vmatpush.bf16.msra.mxu0 0
        %904 = vmatpush.bf16.msra.mxu0 0
        %905 = vmatpush.bf16.msra.mxu0 %v890
        %906 = vmatpush.bf16.msra.mxu0 %v889
        %907 = vmatmul.bf16.gmra.mxu0 %v894
        %v908 = vpop.f32.mrf.mxu0
        %v909 = vadd.f32 0.0, %v908
        %v910 = vpop.f32.mrf.mxu0
        %v911 = vadd.f32 0.0, %v910
        %912 = vmatmul.bf16.gmra.mxu0 %v897
        %v913 = vpop.f32.mrf.mxu0
        %v914 = vadd.f32 0.0, %v913
        %v915 = vpop.f32.mrf.mxu0
        %916 = vdwg.mxu0
        %v917 = vadd.f32 %v229, %v909
        %v918 = vadd.f32 %v231, %v911
        %v919 = vadd.f32 %v234, %v914
        %v920 = vperm.slane %v275, 0
        %v921 = vadd.f32 %v917, %v920
        %v922 = vadd.f32 %v918, %v920
        %v923 = vadd.f32 %v919, %v920
        %v924 = vsel %vm237, %v921, 0.0
        %925 = vadd.xlane.f32.xlu0 %v924
        %v926 = vpop.xlane.xlu0 %925
        %v927 = vsel %vm237, %v922, 0.0
        %928 = vadd.xlane.f32.xlu0 %v927
        %v929 = vpop.xlane.xlu0 %928
        %v930 = vsel %vm284, %v923, 0.0
        %931 = vadd.xlane.f32.xlu0 %v930
        %v932 = vpop.xlane.xlu0 %931
        %v933 = vmul.f32 %v926, %v294
        %v934 = vmul.f32 %v929, %v294
        %v935 = vmul.f32 %v932, %v294
        %v936 = vsub.f32 %v921, %v933
        %v937 = vsub.f32 %v922, %v934
        %v938 = vsub.f32 %v923, %v935
        %v939 = vmul.f32 %v936, %v936
        %v940 = vmul.f32 %v937, %v937
        %v941 = vmul.f32 %v938, %v938
        %v942 = vsel %vm237, %v939, 0.0
        %943 = vadd.xlane.f32.xlu0 %v942
        %v944 = vpop.xlane.xlu0 %943
        %v945 = vsel %vm237, %v940, 0.0
        %946 = vadd.xlane.f32.xlu0 %v945
        %v947 = vpop.xlane.xlu0 %946
        %v948 = vsel %vm284, %v941, 0.0
        %949 = vadd.xlane.f32.xlu0 %v948
        %v950 = vpop.xlane.xlu0 %949
        %v951 = vmul.f32 %v944, %v294
        %v952 = vmul.f32 %v947, %v294
        %v953 = vmul.f32 %v950, %v294
        %v954 = vadd.f32 %v951, 1e-05
        %v955 = vadd.f32 %v952, 1e-05
        %v956 = vadd.f32 %v953, 1e-05
        %v957 = vrsqrt.pop %v954
        %v958 = vmul.f32 %v957, %v954
        %v959 = vmul.f32 %v958, %v957
        %v960 = vmul.f32 0.5, %v959
        %v961 = vsub.f32 1.5, %v960
        %v962 = vmul.f32 %v957, %v961
        %vm963 = vweird.f32 %v954
        %vm964 = vweird.f32 %v957
        %vm965 = vmor %vm963, %vm964
        %v966 = vsel %vm965, %v957, %v962
        %v967 = vrsqrt.pop %v955
        %v968 = vmul.f32 %v967, %v955
        %v969 = vmul.f32 %v968, %v967
        %v970 = vmul.f32 0.5, %v969
        %v971 = vsub.f32 1.5, %v970
        %v972 = vmul.f32 %v967, %v971
        %vm973 = vweird.f32 %v955
        %vm974 = vweird.f32 %v967
        %vm975 = vmor %vm973, %vm974
        %v976 = vsel %vm975, %v967, %v972
        %v977 = vrsqrt.pop %v956
        %v978 = vmul.f32 %v977, %v956
        %v979 = vmul.f32 %v978, %v977
        %v980 = vmul.f32 0.5, %v979
        %v981 = vsub.f32 1.5, %v980
        %v982 = vmul.f32 %v977, %v981
        %vm983 = vweird.f32 %v956
        %vm984 = vweird.f32 %v977
        %vm985 = vmor %vm983, %vm984
        %v986 = vsel %vm985, %v977, %v982
        %v987 = vmul.f32 %v936, %v966
        %v988 = vmul.f32 %v937, %v976
        %v989 = vmul.f32 %v938, %v986
        %v990 = vperm.slane %v276, 0
        %v991 = vmul.f32 %v987, %v990
        %v992 = vmul.f32 %v988, %v990
        %v993 = vmul.f32 %v989, %v990
        %v994 = vperm.slane %v277, 0
        %v995 = vadd.f32 %v991, %v994
        %v996 = vadd.f32 %v992, %v994
        %v997 = vadd.f32 %v993, %v994
        %v998 = vpack.c.bf16 %v996, %v995
        %v999 = vpack.c.bf16 %v997, %v997
        %v1000 = vperm.slane %v278, 0
        %v1005 = vunpack.c.l.b16 %v252
        %v1006 = vunpack.c.l.b16 %v253
        %v1007 = vunpack.c.l.b16 %v254
        %v1008 = vunpack.c.l.b16 %v255
        %v1009 = vpack.c.b16 %v1006, %v1005
        %v1010 = vpack.c.b16 %v1008, %v1007
        %v1014 = vsel %vm237, %v998, 0
        %v1017 = vsel %vm237, %v999, 0
        %1019 = vmatpush.bf16.msra.mxu0 0
        %1020 = vmatpush.bf16.msra.mxu0 0
        %1021 = vmatpush.bf16.msra.mxu0 0
        %1022 = vmatpush.bf16.msra.mxu0 0
        %1023 = vmatpush.bf16.msra.mxu0 0
        %1024 = vmatpush.bf16.msra.mxu0 0
        %1025 = vmatpush.bf16.msra.mxu0 %v1010
        %1026 = vmatpush.bf16.msra.mxu0 %v1009
        %1027 = vmatmul.bf16.gmra.mxu0 %v1014
        %v1028 = vpop.f32.mrf.mxu0
        %v1029 = vadd.f32 %v1000, %v1028
        %v1030 = vpop.f32.mrf.mxu0
        %v1031 = vadd.f32 %v1000, %v1030
        %1032 = vmatmul.bf16.gmra.mxu0 %v1017
        %v1033 = vpop.f32.mrf.mxu0
        %v1034 = vadd.f32 %v1000, %v1033
        %v1035 = vpop.f32.mrf.mxu0
        %1036 = vdwg.mxu0
        %v1037 = vmul.f32 %v1029, 0.5
        %v1038 = vmul.f32 %v1031, 0.5
        %v1039 = vmul.f32 %v1034, 0.5
        %v1040 = vmul.f32 %v1029, 0.70710677
        %v1041 = vmul.f32 %v1031, 0.70710677
        %v1042 = vmul.f32 %v1034, 0.70710677
        %vm1043 = vcmp.ge.f32.partialorder %v1040, 0.0
        %vm1044 = vcmp.ge.f32.partialorder %v1041, 0.0
        %vm1045 = vcmp.ge.f32.partialorder %v1042, 0.0
        %v1046 = vsel %vm1043, 1.0, -1.0
        %v1047 = vsel %vm1044, 1.0, -1.0
        %v1048 = vsel %vm1045, 1.0, -1.0
        %v1049 = vand.u32 2147483647, %v1040
        %v1050 = vand.u32 2147483647, %v1041
        %v1051 = vand.u32 2147483647, %v1042
        %v1052 = vmul.f32 %v1049, 0.3275911
        %v1053 = vmul.f32 %v1050, 0.3275911
        %v1054 = vmul.f32 %v1051, 0.3275911
        %v1055 = vadd.f32 %v1052, 1.0
        %v1056 = vadd.f32 %v1053, 1.0
        %v1057 = vadd.f32 %v1054, 1.0
        %v1058 = vrcp.pop %v1055
        %v1059 = vmul.f32 %v1055, %v1058
        %v1060 = vsub.f32 1.0, %v1059
        %v1061 = vmul.f32 %v1058, %v1060
        %v1062 = vadd.f32 %v1058, %v1061
        %vm1063 = vweird.f32 %v1055
        %vm1064 = vweird.f32 %v1058
        %vm1065 = vmor %vm1063, %vm1064
        %v1066 = vsel %vm1065, %v1058, %v1062
        %v1067 = vand.u32 2147483647, %v1055
        %vm1068 = vcmp.eq.f32.partialorder %v1067, 8.507059e+37
        %v1069 = vand.u32 %v1055, 2147483648
        %v1070 = vor.u32 1.1754944e-38, %v1069
        %v1071 = vsel %vm1068, %v1070, %v1066
        %v1072 = vmul.f32 1.0, %v1071
        %v1073 = vrcp.pop %v1056
        %v1074 = vmul.f32 %v1056, %v1073
        %v1075 = vsub.f32 1.0, %v1074
        %v1076 = vmul.f32 %v1073, %v1075
        %v1077 = vadd.f32 %v1073, %v1076
        %vm1078 = vweird.f32 %v1056
        %vm1079 = vweird.f32 %v1073
        %vm1080 = vmor %vm1078, %vm1079
        %v1081 = vsel %vm1080, %v1073, %v1077
        %v1082 = vand.u32 2147483647, %v1056
        %vm1083 = vcmp.eq.f32.partialorder %v1082, 8.507059e+37
        %v1084 = vand.u32 %v1056, 2147483648
        %v1085 = vor.u32 1.1754944e-38, %v1084
        %v1086 = vsel %vm1083, %v1085, %v1081
        %v1087 = vmul.f32 1.0, %v1086
        %v1088 = vrcp.pop %v1057
        %v1089 = vmul.f32 %v1057, %v1088
        %v1090 = vsub.f32 1.0, %v1089
        %v1091 = vmul.f32 %v1088, %v1090
        %v1092 = vadd.f32 %v1088, %v1091
        %vm1093 = vweird.f32 %v1057
        %vm1094 = vweird.f32 %v1088
        %vm1095 = vmor %vm1093, %vm1094
        %v1096 = vsel %vm1095, %v1088, %v1092
        %v1097 = vand.u32 2147483647, %v1057
        %vm1098 = vcmp.eq.f32.partialorder %v1097, 8.507059e+37
        %v1099 = vand.u32 %v1057, 2147483648
        %v1100 = vor.u32 1.1754944e-38, %v1099
        %v1101 = vsel %vm1098, %v1100, %v1096
        %v1102 = vmul.f32 1.0, %v1101
        %v1103 = vmul.f32 %v1072, 1.0614054
        %v1104 = vmul.f32 %v1087, 1.0614054
        %v1105 = vmul.f32 %v1102, 1.0614054
        %v1106 = vadd.f32 %v1103, -1.4531521
        %v1107 = vadd.f32 %v1104, -1.4531521
        %v1108 = vadd.f32 %v1105, -1.4531521
        %v1109 = vmul.f32 %v1072, %v1106
        %v1110 = vmul.f32 %v1087, %v1107
        %v1111 = vmul.f32 %v1102, %v1108
        %v1112 = vadd.f32 %v1109, 1.4214138
        %v1113 = vadd.f32 %v1110, 1.4214138
        %v1114 = vadd.f32 %v1111, 1.4214138
        %v1115 = vmul.f32 %v1072, %v1112
        %v1116 = vmul.f32 %v1087, %v1113
        %v1117 = vmul.f32 %v1102, %v1114
        %v1118 = vadd.f32 %v1115, -0.28449672
        %v1119 = vadd.f32 %v1116, -0.28449672
        %v1120 = vadd.f32 %v1117, -0.28449672
        %v1121 = vmul.f32 %v1072, %v1118
        %v1122 = vmul.f32 %v1087, %v1119
        %v1123 = vmul.f32 %v1102, %v1120
        %v1124 = vadd.f32 %v1121, 0.2548296
        %v1125 = vadd.f32 %v1122, 0.2548296
        %v1126 = vadd.f32 %v1123, 0.2548296
        %v1127 = vmul.f32 %v1072, %v1124
        %v1128 = vmul.f32 %v1087, %v1125
        %v1129 = vmul.f32 %v1102, %v1126
        %v1130 = vsub.f32 0.0, %v1049
        %v1131 = vsub.f32 0.0, %v1050
        %v1132 = vsub.f32 0.0, %v1051
        %v1133 = vmul.f32 %v1130, %v1049
        %v1134 = vmul.f32 %v1131, %v1050
        %v1135 = vmul.f32 %v1132, %v1051
        %v1136 = vmul.f32 %v1133, 1.442695
        %v1137 = vpow.pop %v1136
        %v1138 = vmul.f32 %v1134, 1.442695
        %v1139 = vpow.pop %v1138
        %v1140 = vmul.f32 %v1135, 1.442695
        %v1141 = vpow.pop %v1140
        %v1142 = vmul.f32 %v1127, %v1137
        %v1143 = vmul.f32 %v1128, %v1139
        %v1144 = vmul.f32 %v1129, %v1141
        %v1145 = vsub.f32 1.0, %v1142
        %v1146 = vsub.f32 1.0, %v1143
        %v1147 = vsub.f32 1.0, %v1144
        %v1148 = vmul.f32 %v1046, %v1145
        %v1149 = vmul.f32 %v1047, %v1146
        %v1150 = vmul.f32 %v1048, %v1147
        %v1151 = vadd.f32 %v1148, 1.0
        %v1152 = vadd.f32 %v1149, 1.0
        %v1153 = vadd.f32 %v1150, 1.0
        %v1154 = vmul.f32 %v1037, %v1151
        %v1155 = vmul.f32 %v1038, %v1152
        %v1156 = vmul.f32 %v1039, %v1153
        %v1157 = vpack.c.bf16 %v1155, %v1154
        %v1158 = vpack.c.bf16 %v1156, %v1156
        %v1159 = vperm.slane %v279, 0
        %v1176 = vunpack.c.l.b16 %v256
        %v1177 = vunpack.c.l.b16 %v257
        %v1178 = vunpack.c.l.b16 %v258
        %v1179 = vunpack.c.l.b16 %v259
        %v1180 = vunpack.c.l.b16 %v260
        %v1181 = vunpack.c.l.b16 %v261
        %v1182 = vunpack.c.l.b16 %v262
        %v1183 = vunpack.c.l.b16 %v263
        %v1184 = vunpack.c.l.b16 %v264
        %v1185 = vunpack.c.l.b16 %v265
        %v1186 = vunpack.c.l.b16 %v266
        %v1187 = vunpack.c.l.b16 %v267
        %v1188 = vunpack.c.l.b16 %v268
        %v1189 = vunpack.c.l.b16 %v269
        %v1190 = vunpack.c.l.b16 %v270
        %v1191 = vunpack.c.l.b16 %v271
        %v1192 = vpack.c.b16 %v1177, %v1176
        %v1193 = vpack.c.b16 %v1179, %v1178
        %v1194 = vpack.c.b16 %v1181, %v1180
        %v1195 = vpack.c.b16 %v1183, %v1182
        %v1196 = vpack.c.b16 %v1185, %v1184
        %v1197 = vpack.c.b16 %v1187, %v1186
        %v1198 = vpack.c.b16 %v1189, %v1188
        %v1199 = vpack.c.b16 %v1191, %v1190
        %1208 = vmatpush.bf16.msra.mxu0 %v1199
        %1209 = vmatpush.bf16.msra.mxu0 %v1198
        %1210 = vmatpush.bf16.msra.mxu0 %v1197
        %1211 = vmatpush.bf16.msra.mxu0 %v1196
        %1212 = vmatpush.bf16.msra.mxu0 %v1195
        %1213 = vmatpush.bf16.msra.mxu0 %v1194
        %1214 = vmatpush.bf16.msra.mxu0 %v1193
        %1215 = vmatpush.bf16.msra.mxu0 %v1192
        %1216 = vmatmul.bf16.gmra.mxu0 %v1157
        %v1217 = vpop.f32.mrf.mxu0
        %v1218 = vadd.f32 %v1159, %v1217
        %v1219 = vpop.f32.mrf.mxu0
        %v1220 = vadd.f32 %v1159, %v1219
        %1221 = vmatmul.bf16.gmra.mxu0 %v1158
        %v1222 = vpop.f32.mrf.mxu0
        %v1223 = vadd.f32 %v1159, %v1222
        %v1224 = vpop.f32.mrf.mxu0
        %1225 = vdwg.mxu0
        %v1226 = vadd.f32 %v921, %v1218
        %v1227 = vadd.f32 %v922, %v1220
        %v1228 = vadd.f32 %v923, %v1223
        %v1229 = vsel %vm237, %v1226, 0.0
        %v1230 = vsel %vm237, %v1227, 0.0
        %v1231 = vsel %vm237, %v1228, 0.0
        %s1232 = scalar_lea.vmem %s159, 24 [#allocation2]
        %1233 = vst [vmem:[%s1232] sm:$0xff] %v1229
        %1234 = vst [vmem:[%s1232 + $0x8] sm:$0xff] %v1230
        %1235 = vst [vmem:[%s1232 + $0x10] sm:$0x1] %v1231
        %v1236 = vld [vmem:[%s1 + $0x90] sm:$0xf]
        %v1237 = vld [vmem:[%s1 + $0x94] sm:$0xf]
        %v1238 = vld [vmem:[%s1 + $0x98] sm:$0xf]
        %v1239 = vld [vmem:[%s1 + $0x9c] sm:$0xf]
        %v1240 = vld [vmem:[%s1 + $0xa0] sm:$0xf]
        %v1241 = vld [vmem:[%s1 + $0xa4] sm:$0xf]
        %v1242 = vld [vmem:[%s1 + $0xa8] sm:$0xf]
        %v1243 = vld [vmem:[%s1 + $0xac] sm:$0xf]
        %v1244 = vld [vmem:[%s1 + $0xb0] sm:$0xf]
        %v1245 = vld [vmem:[%s1 + $0xb4] sm:$0xf]
        %v1246 = vld [vmem:[%s1 + $0xb8] sm:$0xf]
        %v1247 = vld [vmem:[%s1 + $0xbc] sm:$0xf]
        %v1248 = vld [vmem:[%s1 + $0xc0] sm:$0xf]
        %v1249 = vld [vmem:[%s1 + $0xc4] sm:$0xf]
        %v1250 = vld [vmem:[%s1 + $0xc8] sm:$0xf]
        %v1251 = vld [vmem:[%s1 + $0xcc] sm:$0xf]
        %v1252 = vld [vmem:[%s1 + $0xd0] sm:$0xf]
        %v1253 = vld [vmem:[%s1 + $0xd4] sm:$0xf]
        %v1254 = vld [vmem:[%s1 + $0xd8] sm:$0xf]
        %v1255 = vld [vmem:[%s1 + $0xdc] sm:$0xf]
        %v1256 = vld [vmem:[%s1 + $0xe0] sm:$0xf]
        %v1257 = vld [vmem:[%s1 + $0xe4] sm:$0xf]
        %v1258 = vld [vmem:[%s1 + $0xe8] sm:$0xf]
        %v1259 = vld [vmem:[%s1 + $0xec] sm:$0xf]
        %v1260 = vld [vmem:[%s1 + $0xf0] sm:$0xf]
        %v1261 = vld [vmem:[%s1 + $0xf4] sm:$0xf]
        %v1262 = vld [vmem:[%s1 + $0xf8] sm:$0xf]
        %v1263 = vld [vmem:[%s1 + $0xfc] sm:$0xf]
        %v1264 = vld [vmem:[%s2 + $0x8] sm:$0x1]
        %v1265 = vld [vmem:[%s2 + $0x9] sm:$0x1]
        %v1266 = vld [vmem:[%s2 + $0xa] sm:$0x1]
        %v1267 = vld [vmem:[%s2 + $0xb] sm:$0x1]
        %v1268 = vld [vmem:[%s2 + $0xc] sm:$0x1]
        %v1269 = vld [vmem:[%s2 + $0xd] sm:$0x1]
        %v1270 = vld [vmem:[%s2 + $0xe] sm:$0x1]
        %v1271 = vld [vmem:[%s2 + $0xf] sm:$0x1]
        %1272 = vadd.xlane.f32.xlu0 %v1229
        %v1273 = vpop.xlane.xlu0 %1272
        %1274 = vadd.xlane.f32.xlu0 %v1230
        %v1275 = vpop.xlane.xlu0 %1274
        %v1276 = vsel %vm284, %v1228, 0.0
        %1277 = vadd.xlane.f32.xlu0 %v1276
        %v1278 = vpop.xlane.xlu0 %1277
        %v1279 = vmul.f32 %v1273, %v294
        %v1280 = vmul.f32 %v1275, %v294
        %v1281 = vmul.f32 %v1278, %v294
        %v1282 = vsub.f32 %v1226, %v1279
        %v1283 = vsub.f32 %v1227, %v1280
        %v1284 = vsub.f32 %v1228, %v1281
        %v1285 = vmul.f32 %v1282, %v1282
        %v1286 = vmul.f32 %v1283, %v1283
        %v1287 = vmul.f32 %v1284, %v1284
        %v1288 = vsel %vm237, %v1285, 0.0
        %1289 = vadd.xlane.f32.xlu0 %v1288
        %v1290 = vpop.xlane.xlu0 %1289
        %v1291 = vsel %vm237, %v1286, 0.0
        %1292 = vadd.xlane.f32.xlu0 %v1291
        %v1293 = vpop.xlane.xlu0 %1292
        %v1294 = vsel %vm284, %v1287, 0.0
        %1295 = vadd.xlane.f32.xlu0 %v1294
        %v1296 = vpop.xlane.xlu0 %1295
        %v1297 = vmul.f32 %v1290, %v294
        %v1298 = vmul.f32 %v1293, %v294
        %v1299 = vmul.f32 %v1296, %v294
        %v1300 = vadd.f32 %v1297, 1e-05
        %v1301 = vadd.f32 %v1298, 1e-05
        %v1302 = vadd.f32 %v1299, 1e-05
        %v1303 = vrsqrt.pop %v1300
        %v1304 = vmul.f32 %v1303, %v1300
        %v1305 = vmul.f32 %v1304, %v1303
        %v1306 = vmul.f32 0.5, %v1305
        %v1307 = vsub.f32 1.5, %v1306
        %v1308 = vmul.f32 %v1303, %v1307
        %vm1309 = vweird.f32 %v1300
        %vm1310 = vweird.f32 %v1303
        %vm1311 = vmor %vm1309, %vm1310
        %v1312 = vsel %vm1311, %v1303, %v1308
        %v1313 = vrsqrt.pop %v1301
        %v1314 = vmul.f32 %v1313, %v1301
        %v1315 = vmul.f32 %v1314, %v1313
        %v1316 = vmul.f32 0.5, %v1315
        %v1317 = vsub.f32 1.5, %v1316
        %v1318 = vmul.f32 %v1313, %v1317
        %vm1319 = vweird.f32 %v1301
        %vm1320 = vweird.f32 %v1313
        %vm1321 = vmor %vm1319, %vm1320
        %v1322 = vsel %vm1321, %v1313, %v1318
        %v1323 = vrsqrt.pop %v1302
        %v1324 = vmul.f32 %v1323, %v1302
        %v1325 = vmul.f32 %v1324, %v1323
        %v1326 = vmul.f32 0.5, %v1325
        %v1327 = vsub.f32 1.5, %v1326
        %v1328 = vmul.f32 %v1323, %v1327
        %vm1329 = vweird.f32 %v1302
        %vm1330 = vweird.f32 %v1323
        %vm1331 = vmor %vm1329, %vm1330
        %v1332 = vsel %vm1331, %v1323, %v1328
        %v1333 = vmul.f32 %v1282, %v1312
        %v1334 = vmul.f32 %v1283, %v1322
        %v1335 = vmul.f32 %v1284, %v1332
        %v1336 = vperm.slane %v1264, 0
        %v1337 = vmul.f32 %v1333, %v1336
        %v1338 = vmul.f32 %v1334, %v1336
        %v1339 = vmul.f32 %v1335, %v1336
        %v1340 = vperm.slane %v1265, 0
        %v1341 = vadd.f32 %v1337, %v1340
        %v1342 = vadd.f32 %v1338, %v1340
        %v1343 = vadd.f32 %v1339, %v1340
        %v1344 = vpack.c.bf16 %v1342, %v1341
        %v1345 = vpack.c.bf16 %v1343, %v1343
        %v1346 = vperm.slane %v1266, 0
        %v1351 = vunpack.c.l.b16 %v1236
        %v1352 = vunpack.c.l.b16 %v1237
        %v1353 = vunpack.c.l.b16 %v1238
        %v1354 = vunpack.c.l.b16 %v1239
        %v1355 = vpack.c.b16 %v1352, %v1351
        %v1356 = vpack.c.b16 %v1354, %v1353
        %v1360 = vsel %vm237, %v1344, 0
        %v1363 = vsel %vm237, %v1345, 0
        %1365 = vmatpush.bf16.msra.mxu0 0
        %1366 = vmatpush.bf16.msra.mxu0 0
        %1367 = vmatpush.bf16.msra.mxu0 0
        %1368 = vmatpush.bf16.msra.mxu0 0
        %1369 = vmatpush.bf16.msra.mxu0 0
        %1370 = vmatpush.bf16.msra.mxu0 0
        %1371 = vmatpush.bf16.msra.mxu0 %v1356
        %1372 = vmatpush.bf16.msra.mxu0 %v1355
        %1373 = vmatmul.bf16.gmra.mxu0 %v1360
        %v1374 = vpop.f32.mrf.mxu0
        %v1375 = vadd.f32 %v1346, %v1374
        %v1376 = vpop.f32.mrf.mxu0
        %v1377 = vadd.f32 %v1346, %v1376
        %1378 = vmatmul.bf16.gmra.mxu0 %v1363
        %v1379 = vpop.f32.mrf.mxu0
        %v1380 = vadd.f32 %v1346, %v1379
        %v1381 = vpop.f32.mrf.mxu0
        %1382 = vdwg.mxu0
        %v1383 = vpack.c.bf16 %v1375, %v1375
        %v1384 = vpack.c.bf16 %v1377, %v1377
        %v1385 = vpack.c.bf16 %v1380, %v1380
        %v1389 = vunpack.c.l.b16 %v1383
        %v1390 = vunpack.c.l.b16 %v1384
        %v1391 = vunpack.c.l.b16 %v1385
        %v1392 = vpack.c.b16 %v1390, %v1389
        %v1393 = vpack.c.b16 %v1391, %v1391
        %1394 = vrot.lane.b32.xlu0 %v1392, 96
        %v1395 = vpop.permute.xlu0 %1394
        %1396 = vrot.lane.b32.xlu0 %v1393, 96
        %v1397 = vpop.permute.xlu0 %1396
        %v1399 = vsel %vm871, %v1392, 0
        %v1402 = vsel %vm871, %v1393, 0
        %v1405 = vsel %vm871, %v1395, 0
        %v1408 = vsel %vm871, %v1397, 0
        %1410 = vmatpush.bf16.xpose.msra.mxu0 0
        %1411 = vmatpush.bf16.xpose.msra.mxu0 0
        %1412 = vmatpush.bf16.xpose.msra.mxu0 0
        %1413 = vmatpush.bf16.xpose.msra.mxu0 0
        %1414 = vmatpush.bf16.xpose.msra.mxu0 0
        %1415 = vmatpush.bf16.xpose.msra.mxu0 0
        %1416 = vmatpush.bf16.xpose.msra.mxu0 %v1408
        %1417 = vmatpush.bf16.xpose.msra.mxu0 %v1405
        %1418 = vmatmul.bf16.gmra.mxu0 %v1399
        %v1419 = vpop.f32.mrf.mxu0
        %v1420 = vadd.f32 0.0, %v1419
        %v1421 = vpop.f32.mrf.mxu0
        %v1422 = vadd.f32 0.0, %v1421
        %1423 = vmatmul.bf16.gmra.mxu0 %v1402
        %v1424 = vpop.f32.mrf.mxu0
        %v1425 = vadd.f32 0.0, %v1424
        %v1426 = vpop.f32.mrf.mxu0
        %1427 = vdwg.mxu0
        %v1428 = vsel %vm445, %v1420, -inf
        %1429 = vmax.xlane.f32.xlu0 %v1428
        %v1430 = vpop.xlane.xlu0 %1429
        %v1431 = vsel %vm445, %v1422, -inf
        %1432 = vmax.xlane.f32.xlu0 %v1431
        %v1433 = vpop.xlane.xlu0 %1432
        %v1434 = vsel %vm452, %v1425, -inf
        %1435 = vmax.xlane.f32.xlu0 %v1434
        %v1436 = vpop.xlane.xlu0 %1435
        %v1437 = vsub.f32 %v1420, %v1430
        %v1438 = vsub.f32 %v1422, %v1433
        %v1439 = vsub.f32 %v1425, %v1436
        %v1440 = vmul.f32 %v1437, 1.442695
        %v1441 = vpow.pop %v1440
        %v1442 = vmul.f32 %v1438, 1.442695
        %v1443 = vpow.pop %v1442
        %v1444 = vmul.f32 %v1439, 1.442695
        %v1445 = vpow.pop %v1444
        %v1446 = vsel %vm445, %v1441, 0.0
        %1447 = vadd.xlane.f32.xlu0 %v1446
        %v1448 = vpop.xlane.xlu0 %1447
        %v1449 = vsel %vm445, %v1443, 0.0
        %1450 = vadd.xlane.f32.xlu0 %v1449
        %v1451 = vpop.xlane.xlu0 %1450
        %v1452 = vsel %vm452, %v1445, 0.0
        %1453 = vadd.xlane.f32.xlu0 %v1452
        %v1454 = vpop.xlane.xlu0 %1453
        %v1455 = vrcp.pop %v1448
        %v1456 = vrcp.pop %v1451
        %v1457 = vrcp.pop %v1454
        %v1458 = vmul.f32 %v1441, %v1455
        %v1459 = vmul.f32 %v1443, %v1456
        %v1460 = vmul.f32 %v1445, %v1457
        %v1461 = vpack.c.bf16 %v1459, %v1458
        %v1462 = vpack.c.bf16 %v1460, %v1460
        %1463 = vrot.lane.b32.xlu0 %v1392, 64
        %v1464 = vpop.permute.xlu0 %1463
        %1465 = vrot.lane.b32.xlu0 %v1393, 64
        %v1466 = vpop.permute.xlu0 %1465
        %v1469 = vsel %vm445, %v1461, 0
        %v1472 = vsel %vm445, %v1462, 0
        %v1475 = vand.u32 %v1466, %v495
        %1477 = vmatpush.bf16.msra.mxu0 0
        %1478 = vmatpush.bf16.msra.mxu0 0
        %1479 = vmatpush.bf16.msra.mxu0 0
        %1480 = vmatpush.bf16.msra.mxu0 0
        %1481 = vmatpush.bf16.msra.mxu0 0
        %1482 = vmatpush.bf16.msra.mxu0 0
        %1483 = vmatpush.bf16.msra.mxu0 %v1475
        %1484 = vmatpush.bf16.msra.mxu0 %v1464
        %1485 = vmatmul.bf16.gmra.mxu0 %v1469
        %v1486 = vpop.f32.mrf.mxu0
        %v1487 = vadd.f32 0.0, %v1486
        %v1488 = vpop.f32.mrf.mxu0
        %v1489 = vadd.f32 0.0, %v1488
        %1490 = vmatmul.bf16.gmra.mxu0 %v1472
        %v1491 = vpop.f32.mrf.mxu0
        %v1492 = vadd.f32 0.0, %v1491
        %v1493 = vpop.f32.mrf.mxu0
        %1494 = vdwg.mxu0
        %1495 = vrot.lane.b32.xlu0 %v1392, 112
        %v1496 = vpop.permute.xlu0 %1495
        %1497 = vrot.lane.b32.xlu0 %v1393, 112
        %v1498 = vpop.permute.xlu0 %1497
        %1499 = vrot.lane.b32.xlu0 %v1392, 80
        %v1500 = vpop.permute.xlu0 %1499
        %1501 = vrot.lane.b32.xlu0 %v1393, 80
        %v1502 = vpop.permute.xlu0 %1501
        %v1504 = vsel %vm871, %v1496, 0
        %v1507 = vsel %vm871, %v1498, 0
        %v1510 = vsel %vm871, %v1500, 0
        %v1513 = vsel %vm871, %v1502, 0
        %1515 = vmatpush.bf16.xpose.msra.mxu0 0
        %1516 = vmatpush.bf16.xpose.msra.mxu0 0
        %1517 = vmatpush.bf16.xpose.msra.mxu0 0
        %1518 = vmatpush.bf16.xpose.msra.mxu0 0
        %1519 = vmatpush.bf16.xpose.msra.mxu0 0
        %1520 = vmatpush.bf16.xpose.msra.mxu0 0
        %1521 = vmatpush.bf16.xpose.msra.mxu0 %v1513
        %1522 = vmatpush.bf16.xpose.msra.mxu0 %v1510
        %1523 = vmatmul.bf16.gmra.mxu0 %v1504
        %v1524 = vpop.f32.mrf.mxu0
        %v1525 = vadd.f32 0.0, %v1524
        %v1526 = vpop.f32.mrf.mxu0
        %v1527 = vadd.f32 0.0, %v1526
        %1528 = vmatmul.bf16.gmra.mxu0 %v1507
        %v1529 = vpop.f32.mrf.mxu0
        %v1530 = vadd.f32 0.0, %v1529
        %v1531 = vpop.f32.mrf.mxu0
        %1532 = vdwg.mxu0
        %v1533 = vsel %vm445, %v1525, -inf
        %1534 = vmax.xlane.f32.xlu0 %v1533
        %v1535 = vpop.xlane.xlu0 %1534
        %v1536 = vsel %vm445, %v1527, -inf
        %1537 = vmax.xlane.f32.xlu0 %v1536
        %v1538 = vpop.xlane.xlu0 %1537
        %v1539 = vsel %vm452, %v1530, -inf
        %1540 = vmax.xlane.f32.xlu0 %v1539
        %v1541 = vpop.xlane.xlu0 %1540
        %v1542 = vsub.f32 %v1525, %v1535
        %v1543 = vsub.f32 %v1527, %v1538
        %v1544 = vsub.f32 %v1530, %v1541
        %v1545 = vmul.f32 %v1542, 1.442695
        %v1546 = vpow.pop %v1545
        %v1547 = vmul.f32 %v1543, 1.442695
        %v1548 = vpow.pop %v1547
        %v1549 = vmul.f32 %v1544, 1.442695
        %v1550 = vpow.pop %v1549
        %v1551 = vsel %vm445, %v1546, 0.0
        %1552 = vadd.xlane.f32.xlu0 %v1551
        %v1553 = vpop.xlane.xlu0 %1552
        %v1554 = vsel %vm445, %v1548, 0.0
        %1555 = vadd.xlane.f32.xlu0 %v1554
        %v1556 = vpop.xlane.xlu0 %1555
        %v1557 = vsel %vm452, %v1550, 0.0
        %1558 = vadd.xlane.f32.xlu0 %v1557
        %v1559 = vpop.xlane.xlu0 %1558
        %v1560 = vrcp.pop %v1553
        %v1561 = vrcp.pop %v1556
        %v1562 = vrcp.pop %v1559
        %v1563 = vmul.f32 %v1546, %v1560
        %v1564 = vmul.f32 %v1548, %v1561
        %v1565 = vmul.f32 %v1550, %v1562
        %v1566 = vpack.c.bf16 %v1564, %v1563
        %v1567 = vpack.c.bf16 %v1565, %v1565
        %1568 = vrot.lane.b32.xlu0 %v1392, 48
        %v1569 = vpop.permute.xlu0 %1568
        %1570 = vrot.lane.b32.xlu0 %v1393, 48
        %v1571 = vpop.permute.xlu0 %1570
        %v1574 = vsel %vm445, %v1566, 0
        %v1577 = vsel %vm445, %v1567, 0
        %v1580 = vand.u32 %v1571, %v495
        %1582 = vmatpush.bf16.msra.mxu0 0
        %1583 = vmatpush.bf16.msra.mxu0 0
        %1584 = vmatpush.bf16.msra.mxu0 0
        %1585 = vmatpush.bf16.msra.mxu0 0
        %1586 = vmatpush.bf16.msra.mxu0 0
        %1587 = vmatpush.bf16.msra.mxu0 0
        %1588 = vmatpush.bf16.msra.mxu0 %v1580
        %1589 = vmatpush.bf16.msra.mxu0 %v1569
        %1590 = vmatmul.bf16.gmra.mxu0 %v1574
        %v1591 = vpop.f32.mrf.mxu0
        %v1592 = vadd.f32 0.0, %v1591
        %v1593 = vpop.f32.mrf.mxu0
        %v1594 = vadd.f32 0.0, %v1593
        %1595 = vmatmul.bf16.gmra.mxu0 %v1577
        %v1596 = vpop.f32.mrf.mxu0
        %v1597 = vadd.f32 0.0, %v1596
        %v1598 = vpop.f32.mrf.mxu0
        %1599 = vdwg.mxu0
        %1603 = vrot.lane.b32.xlu0 %v1592, 16
        %v1604 = vpop.permute.xlu0 %1603
        %1605 = vrot.lane.b32.xlu0 %v1594, 16
        %v1606 = vpop.permute.xlu0 %1605
        %1607 = vrot.lane.b32.xlu0 %v1597, 16
        %v1608 = vpop.permute.xlu0 %1607
        %v1612 = vsel %vm871, %v1487, %v1604
        %v1613 = vsel %vm871, %v1489, %v1606
        %v1614 = vsel %vm871, %v1492, %v1608
        %v1615 = vpack.c.bf16 %v1613, %v1612
        %v1616 = vpack.c.bf16 %v1614, %v1614
        %v1621 = vunpack.c.l.b16 %v1240
        %v1622 = vunpack.c.l.b16 %v1241
        %v1623 = vunpack.c.l.b16 %v1242
        %v1624 = vunpack.c.l.b16 %v1243
        %v1625 = vpack.c.b16 %v1622, %v1621
        %v1626 = vpack.c.b16 %v1624, %v1623
        %v1630 = vsel %vm237, %v1615, 0
        %v1633 = vsel %vm237, %v1616, 0
        %1635 = vmatpush.bf16.msra.mxu0 0
        %1636 = vmatpush.bf16.msra.mxu0 0
        %1637 = vmatpush.bf16.msra.mxu0 0
        %1638 = vmatpush.bf16.msra.mxu0 0
        %1639 = vmatpush.bf16.msra.mxu0 0
        %1640 = vmatpush.bf16.msra.mxu0 0
        %1641 = vmatpush.bf16.msra.mxu0 %v1626
        %1642 = vmatpush.bf16.msra.mxu0 %v1625
        %1643 = vmatmul.bf16.gmra.mxu0 %v1630
        %v1644 = vpop.f32.mrf.mxu0
        %v1645 = vadd.f32 0.0, %v1644
        %v1646 = vpop.f32.mrf.mxu0
        %v1647 = vadd.f32 0.0, %v1646
        %1648 = vmatmul.bf16.gmra.mxu0 %v1633
        %v1649 = vpop.f32.mrf.mxu0
        %v1650 = vadd.f32 0.0, %v1649
        %v1651 = vpop.f32.mrf.mxu0
        %1652 = vdwg.mxu0
        %v1653 = vadd.f32 %v1226, %v1645
        %v1654 = vadd.f32 %v1227, %v1647
        %v1655 = vadd.f32 %v1228, %v1650
        %v1656 = vperm.slane %v1267, 0
        %v1657 = vadd.f32 %v1653, %v1656
        %v1658 = vadd.f32 %v1654, %v1656
        %v1659 = vadd.f32 %v1655, %v1656
        %v1660 = vsel %vm237, %v1657, 0.0
        %1661 = vadd.xlane.f32.xlu0 %v1660
        %v1662 = vpop.xlane.xlu0 %1661
        %v1663 = vsel %vm237, %v1658, 0.0
        %1664 = vadd.xlane.f32.xlu0 %v1663
        %v1665 = vpop.xlane.xlu0 %1664
        %v1666 = vsel %vm284, %v1659, 0.0
        %1667 = vadd.xlane.f32.xlu0 %v1666
        %v1668 = vpop.xlane.xlu0 %1667
        %v1669 = vmul.f32 %v1662, %v294
        %v1670 = vmul.f32 %v1665, %v294
        %v1671 = vmul.f32 %v1668, %v294
        %v1672 = vsub.f32 %v1657, %v1669
        %v1673 = vsub.f32 %v1658, %v1670
        %v1674 = vsub.f32 %v1659, %v1671
        %v1675 = vmul.f32 %v1672, %v1672
        %v1676 = vmul.f32 %v1673, %v1673
        %v1677 = vmul.f32 %v1674, %v1674
        %v1678 = vsel %vm237, %v1675, 0.0
        %1679 = vadd.xlane.f32.xlu0 %v1678
        %v1680 = vpop.xlane.xlu0 %1679
        %v1681 = vsel %vm237, %v1676, 0.0
        %1682 = vadd.xlane.f32.xlu0 %v1681
        %v1683 = vpop.xlane.xlu0 %1682
        %v1684 = vsel %vm284, %v1677, 0.0
        %1685 = vadd.xlane.f32.xlu0 %v1684
        %v1686 = vpop.xlane.xlu0 %1685
        %v1687 = vmul.f32 %v1680, %v294
        %v1688 = vmul.f32 %v1683, %v294
        %v1689 = vmul.f32 %v1686, %v294
        %v1690 = vadd.f32 %v1687, 1e-05
        %v1691 = vadd.f32 %v1688, 1e-05
        %v1692 = vadd.f32 %v1689, 1e-05
        %v1693 = vrsqrt.pop %v1690
        %v1694 = vmul.f32 %v1693, %v1690
        %v1695 = vmul.f32 %v1694, %v1693
        %v1696 = vmul.f32 0.5, %v1695
        %v1697 = vsub.f32 1.5, %v1696
        %v1698 = vmul.f32 %v1693, %v1697
        %vm1699 = vweird.f32 %v1690
        %vm1700 = vweird.f32 %v1693
        %vm1701 = vmor %vm1699, %vm1700
        %v1702 = vsel %vm1701, %v1693, %v1698
        %v1703 = vrsqrt.pop %v1691
        %v1704 = vmul.f32 %v1703, %v1691
        %v1705 = vmul.f32 %v1704, %v1703
        %v1706 = vmul.f32 0.5, %v1705
        %v1707 = vsub.f32 1.5, %v1706
        %v1708 = vmul.f32 %v1703, %v1707
        %vm1709 = vweird.f32 %v1691
        %vm1710 = vweird.f32 %v1703
        %vm1711 = vmor %vm1709, %vm1710
        %v1712 = vsel %vm1711, %v1703, %v1708
        %v1713 = vrsqrt.pop %v1692
        %v1714 = vmul.f32 %v1713, %v1692
        %v1715 = vmul.f32 %v1714, %v1713
        %v1716 = vmul.f32 0.5, %v1715
        %v1717 = vsub.f32 1.5, %v1716
        %v1718 = vmul.f32 %v1713, %v1717
        %vm1719 = vweird.f32 %v1692
        %vm1720 = vweird.f32 %v1713
        %vm1721 = vmor %vm1719, %vm1720
        %v1722 = vsel %vm1721, %v1713, %v1718
        %v1723 = vmul.f32 %v1672, %v1702
        %v1724 = vmul.f32 %v1673, %v1712
        %v1725 = vmul.f32 %v1674, %v1722
        %v1726 = vperm.slane %v1268, 0
        %v1727 = vmul.f32 %v1723, %v1726
        %v1728 = vmul.f32 %v1724, %v1726
        %v1729 = vmul.f32 %v1725, %v1726
        %v1730 = vperm.slane %v1269, 0
        %v1731 = vadd.f32 %v1727, %v1730
        %v1732 = vadd.f32 %v1728, %v1730
        %v1733 = vadd.f32 %v1729, %v1730
        %v1734 = vpack.c.bf16 %v1732, %v1731
        %v1735 = vpack.c.bf16 %v1733, %v1733
        %v1736 = vperm.slane %v1270, 0
        %v1741 = vunpack.c.l.b16 %v1244
        %v1742 = vunpack.c.l.b16 %v1245
        %v1743 = vunpack.c.l.b16 %v1246
        %v1744 = vunpack.c.l.b16 %v1247
        %v1745 = vpack.c.b16 %v1742, %v1741
        %v1746 = vpack.c.b16 %v1744, %v1743
        %v1750 = vsel %vm237, %v1734, 0
        %v1753 = vsel %vm237, %v1735, 0
        %1755 = vmatpush.bf16.msra.mxu0 0
        %1756 = vmatpush.bf16.msra.mxu0 0
        %1757 = vmatpush.bf16.msra.mxu0 0
        %1758 = vmatpush.bf16.msra.mxu0 0
        %1759 = vmatpush.bf16.msra.mxu0 0
        %1760 = vmatpush.bf16.msra.mxu0 0
        %1761 = vmatpush.bf16.msra.mxu0 %v1746
        %1762 = vmatpush.bf16.msra.mxu0 %v1745
        %1763 = vmatmul.bf16.gmra.mxu0 %v1750
        %v1764 = vpop.f32.mrf.mxu0
        %v1765 = vadd.f32 %v1736, %v1764
        %v1766 = vpop.f32.mrf.mxu0
        %v1767 = vadd.f32 %v1736, %v1766
        %1768 = vmatmul.bf16.gmra.mxu0 %v1753
        %v1769 = vpop.f32.mrf.mxu0
        %v1770 = vadd.f32 %v1736, %v1769
        %v1771 = vpop.f32.mrf.mxu0
        %1772 = vdwg.mxu0
        %v1773 = vmul.f32 %v1765, 0.5
        %v1774 = vmul.f32 %v1767, 0.5
        %v1775 = vmul.f32 %v1770, 0.5
        %v1776 = vmul.f32 %v1765, 0.70710677
        %v1777 = vmul.f32 %v1767, 0.70710677
        %v1778 = vmul.f32 %v1770, 0.70710677
        %vm1779 = vcmp.ge.f32.partialorder %v1776, 0.0
        %vm1780 = vcmp.ge.f32.partialorder %v1777, 0.0
        %vm1781 = vcmp.ge.f32.partialorder %v1778, 0.0
        %v1782 = vsel %vm1779, 1.0, -1.0
        %v1783 = vsel %vm1780, 1.0, -1.0
        %v1784 = vsel %vm1781, 1.0, -1.0
        %v1785 = vand.u32 2147483647, %v1776
        %v1786 = vand.u32 2147483647, %v1777
        %v1787 = vand.u32 2147483647, %v1778
        %v1788 = vmul.f32 %v1785, 0.3275911
        %v1789 = vmul.f32 %v1786, 0.3275911
        %v1790 = vmul.f32 %v1787, 0.3275911
        %v1791 = vadd.f32 %v1788, 1.0
        %v1792 = vadd.f32 %v1789, 1.0
        %v1793 = vadd.f32 %v1790, 1.0
        %v1794 = vrcp.pop %v1791
        %v1795 = vmul.f32 %v1791, %v1794
        %v1796 = vsub.f32 1.0, %v1795
        %v1797 = vmul.f32 %v1794, %v1796
        %v1798 = vadd.f32 %v1794, %v1797
        %vm1799 = vweird.f32 %v1791
        %vm1800 = vweird.f32 %v1794
        %vm1801 = vmor %vm1799, %vm1800
        %v1802 = vsel %vm1801, %v1794, %v1798
        %v1803 = vand.u32 2147483647, %v1791
        %vm1804 = vcmp.eq.f32.partialorder %v1803, 8.507059e+37
        %v1805 = vand.u32 %v1791, 2147483648
        %v1806 = vor.u32 1.1754944e-38, %v1805
        %v1807 = vsel %vm1804, %v1806, %v1802
        %v1808 = vmul.f32 1.0, %v1807
        %v1809 = vrcp.pop %v1792
        %v1810 = vmul.f32 %v1792, %v1809
        %v1811 = vsub.f32 1.0, %v1810
        %v1812 = vmul.f32 %v1809, %v1811
        %v1813 = vadd.f32 %v1809, %v1812
        %vm1814 = vweird.f32 %v1792
        %vm1815 = vweird.f32 %v1809
        %vm1816 = vmor %vm1814, %vm1815
        %v1817 = vsel %vm1816, %v1809, %v1813
        %v1818 = vand.u32 2147483647, %v1792
        %vm1819 = vcmp.eq.f32.partialorder %v1818, 8.507059e+37
        %v1820 = vand.u32 %v1792, 2147483648
        %v1821 = vor.u32 1.1754944e-38, %v1820
        %v1822 = vsel %vm1819, %v1821, %v1817
        %v1823 = vmul.f32 1.0, %v1822
        %v1824 = vrcp.pop %v1793
        %v1825 = vmul.f32 %v1793, %v1824
        %v1826 = vsub.f32 1.0, %v1825
        %v1827 = vmul.f32 %v1824, %v1826
        %v1828 = vadd.f32 %v1824, %v1827
        %vm1829 = vweird.f32 %v1793
        %vm1830 = vweird.f32 %v1824
        %vm1831 = vmor %vm1829, %vm1830
        %v1832 = vsel %vm1831, %v1824, %v1828
        %v1833 = vand.u32 2147483647, %v1793
        %vm1834 = vcmp.eq.f32.partialorder %v1833, 8.507059e+37
        %v1835 = vand.u32 %v1793, 2147483648
        %v1836 = vor.u32 1.1754944e-38, %v1835
        %v1837 = vsel %vm1834, %v1836, %v1832
        %v1838 = vmul.f32 1.0, %v1837
        %v1839 = vmul.f32 %v1808, 1.0614054
        %v1840 = vmul.f32 %v1823, 1.0614054
        %v1841 = vmul.f32 %v1838, 1.0614054
        %v1842 = vadd.f32 %v1839, -1.4531521
        %v1843 = vadd.f32 %v1840, -1.4531521
        %v1844 = vadd.f32 %v1841, -1.4531521
        %v1845 = vmul.f32 %v1808, %v1842
        %v1846 = vmul.f32 %v1823, %v1843
        %v1847 = vmul.f32 %v1838, %v1844
        %v1848 = vadd.f32 %v1845, 1.4214138
        %v1849 = vadd.f32 %v1846, 1.4214138
        %v1850 = vadd.f32 %v1847, 1.4214138
        %v1851 = vmul.f32 %v1808, %v1848
        %v1852 = vmul.f32 %v1823, %v1849
        %v1853 = vmul.f32 %v1838, %v1850
        %v1854 = vadd.f32 %v1851, -0.28449672
        %v1855 = vadd.f32 %v1852, -0.28449672
        %v1856 = vadd.f32 %v1853, -0.28449672
        %v1857 = vmul.f32 %v1808, %v1854
        %v1858 = vmul.f32 %v1823, %v1855
        %v1859 = vmul.f32 %v1838, %v1856
        %v1860 = vadd.f32 %v1857, 0.2548296
        %v1861 = vadd.f32 %v1858, 0.2548296
        %v1862 = vadd.f32 %v1859, 0.2548296
        %v1863 = vmul.f32 %v1808, %v1860
        %v1864 = vmul.f32 %v1823, %v1861
        %v1865 = vmul.f32 %v1838, %v1862
        %v1866 = vsub.f32 0.0, %v1785
        %v1867 = vsub.f32 0.0, %v1786
        %v1868 = vsub.f32 0.0, %v1787
        %v1869 = vmul.f32 %v1866, %v1785
        %v1870 = vmul.f32 %v1867, %v1786
        %v1871 = vmul.f32 %v1868, %v1787
        %v1872 = vmul.f32 %v1869, 1.442695
        %v1873 = vpow.pop %v1872
        %v1874 = vmul.f32 %v1870, 1.442695
        %v1875 = vpow.pop %v1874
        %v1876 = vmul.f32 %v1871, 1.442695
        %v1877 = vpow.pop %v1876
        %v1878 = vmul.f32 %v1863, %v1873
        %v1879 = vmul.f32 %v1864, %v1875
        %v1880 = vmul.f32 %v1865, %v1877
        %v1881 = vsub.f32 1.0, %v1878
        %v1882 = vsub.f32 1.0, %v1879
        %v1883 = vsub.f32 1.0, %v1880
        %v1884 = vmul.f32 %v1782, %v1881
        %v1885 = vmul.f32 %v1783, %v1882
        %v1886 = vmul.f32 %v1784, %v1883
        %v1887 = vadd.f32 %v1884, 1.0
        %v1888 = vadd.f32 %v1885, 1.0
        %v1889 = vadd.f32 %v1886, 1.0
        %v1890 = vmul.f32 %v1773, %v1887
        %v1891 = vmul.f32 %v1774, %v1888
        %v1892 = vmul.f32 %v1775, %v1889
        %v1893 = vpack.c.bf16 %v1891, %v1890
        %v1894 = vpack.c.bf16 %v1892, %v1892
        %v1895 = vperm.slane %v1271, 0
        %v1912 = vunpack.c.l.b16 %v1248
        %v1913 = vunpack.c.l.b16 %v1249
        %v1914 = vunpack.c.l.b16 %v1250
        %v1915 = vunpack.c.l.b16 %v1251
        %v1916 = vunpack.c.l.b16 %v1252
        %v1917 = vunpack.c.l.b16 %v1253
        %v1918 = vunpack.c.l.b16 %v1254
        %v1919 = vunpack.c.l.b16 %v1255
        %v1920 = vunpack.c.l.b16 %v1256
        %v1921 = vunpack.c.l.b16 %v1257
        %v1922 = vunpack.c.l.b16 %v1258
        %v1923 = vunpack.c.l.b16 %v1259
        %v1924 = vunpack.c.l.b16 %v1260
        %v1925 = vunpack.c.l.b16 %v1261
        %v1926 = vunpack.c.l.b16 %v1262
        %v1927 = vunpack.c.l.b16 %v1263
        %v1928 = vpack.c.b16 %v1913, %v1912
        %v1929 = vpack.c.b16 %v1915, %v1914
        %v1930 = vpack.c.b16 %v1917, %v1916
        %v1931 = vpack.c.b16 %v1919, %v1918
        %v1932 = vpack.c.b16 %v1921, %v1920
        %v1933 = vpack.c.b16 %v1923, %v1922
        %v1934 = vpack.c.b16 %v1925, %v1924
        %v1935 = vpack.c.b16 %v1927, %v1926
        %1944 = vmatpush.bf16.msra.mxu0 %v1935
        %1945 = vmatpush.bf16.msra.mxu0 %v1934
        %1946 = vmatpush.bf16.msra.mxu0 %v1933
        %1947 = vmatpush.bf16.msra.mxu0 %v1932
        %1948 = vmatpush.bf16.msra.mxu0 %v1931
        %1949 = vmatpush.bf16.msra.mxu0 %v1930
        %1950 = vmatpush.bf16.msra.mxu0 %v1929
        %1951 = vmatpush.bf16.msra.mxu0 %v1928
        %1952 = vmatmul.bf16.gmra.mxu0 %v1893
        %v1953 = vpop.f32.mrf.mxu0
        %v1954 = vadd.f32 %v1895, %v1953
        %v1955 = vpop.f32.mrf.mxu0
        %v1956 = vadd.f32 %v1895, %v1955
        %1957 = vmatmul.bf16.gmra.mxu0 %v1894
        %v1958 = vpop.f32.mrf.mxu0
        %v1959 = vadd.f32 %v1895, %v1958
        %v1960 = vpop.f32.mrf.mxu0
        %1961 = vdwg.mxu0
        %v1962 = vadd.f32 %v1657, %v1954
        %v1963 = vadd.f32 %v1658, %v1956
        %v1964 = vadd.f32 %v1659, %v1959
        %v1965 = vsel %vm237, %v1962, 0.0
        %v1966 = vsel %vm237, %v1963, 0.0
        %v1967 = vsel %vm237, %v1964, 0.0
        %s1968 = scalar_lea.vmem %s159, 48 [#allocation2]
        %1969 = vst [vmem:[%s1968] sm:$0xff] %v1965
        %1970 = vst [vmem:[%s1968 + $0x8] sm:$0xff] %v1966
        %1971 = vst [vmem:[%s1968 + $0x10] sm:$0x1] %v1967
        %s1972 = sand.u32 %s90, 1
        %s1973 = sand.u32 %s90, 1
        %s1974 = smul.addr %s1973, 72
        %s1975 = scalar_lea.vmem [#allocation2], %s1974
        // Predicated region
        $region33: #{_lambda_.1} parent=31 // pred_check
          %p1976 = pneg %p100
        $region34: #{_lambda_.1} parent=31 // pred_check_branch
          %1978 = sbr.rel (%p1976) target = $region36
        $region35: #{_lambda_.1} parent=31 // pred_region
          %s1979 = smul.addr %s14, 3
          %s1980 = smul.addr %s1979, 8
          %s1981 = scalar_lea.vmem %s3, %s1980
          // Predicated region
          $region37: #{_lambda_.1} parent=35 // pred_check
            _
          $region38: #{_lambda_.1} parent=35 // pred_check_branch
            %1983 = sbr.rel (0) target = $region40
          $region39: #{_lambda_.1} parent=35 // pred_region
            // Predicated region
            $region41: #{_lambda_.1} parent=39 // pred_check
              _
            $region42: #{_lambda_.1} parent=39 // pred_check_branch
              %1985 = sbr.rel (0) target = $region44
            $region43: #{_lambda_.1} parent=39 // pred_region
              // Predicated region
              $region56: #{_lambda_.1} parent=43 // pred_check
                _
              $region57: #{_lambda_.1} parent=43 // pred_check_branch
                %2017 = sbr.rel (0) target = $region59
              $region58: #{_lambda_.1} parent=43 // pred_region
                loop: start=0, step=1, limit=1
                $region60: #{_lambda_.1} parent=58 // loop_pre_header
                  _
                $region61: #{_lambda_.1} parent=58 // loop_header
                  %s2019 = sphi 0, %s2023
                  %p2020 = scmp.ge.s32.totalorder %s2019, 1
                  %s2024 = sphi %s1975, %s1975
                  %s2025 = sphi %s1981, %s1981
                $region62: #{_lambda_.1} parent=58 // loop_header_branch
                  %2022 = sbr.rel (%p2020) target = $region66
                $region63: #{_lambda_.1} parent=58 // loop_body
                  %v2026 = vld [vmem:[%s2024] sm:$0xff]
                  %2027 = vst [vmem:[%s2025] sm:$0xff] %v2026
                  %v2028 = vld [vmem:[%s2024 + $0x8] sm:$0xff]
                  %2029 = vst [vmem:[%s2025 + $0x8] sm:$0xff] %v2028
                  %v2030 = vld [vmem:[%s2024 + $0x10] sm:$0xff]
                  %2031 = vst [vmem:[%s2025 + $0x10] sm:$0xff] %v2030
                  %v2032 = vld [vmem:[%s2024 + $0x18] sm:$0xff]
                  %2033 = vst [vmem:[%s2025 + $0x30] sm:$0xff] %v2032
                  %v2034 = vld [vmem:[%s2024 + $0x20] sm:$0xff]
                  %2035 = vst [vmem:[%s2025 + $0x38] sm:$0xff] %v2034
                  %v2036 = vld [vmem:[%s2024 + $0x28] sm:$0xff]
                  %2037 = vst [vmem:[%s2025 + $0x40] sm:$0xff] %v2036
                  %v2038 = vld [vmem:[%s2024 + $0x30] sm:$0xff]
                  %2039 = vst [vmem:[%s2025 + $0x60] sm:$0xff] %v2038
                  %v2040 = vld [vmem:[%s2024 + $0x38] sm:$0xff]
                  %2041 = vst [vmem:[%s2025 + $0x68] sm:$0xff] %v2040
                  %v2042 = vld [vmem:[%s2024 + $0x40] sm:$0xff]
                  %2043 = vst [vmem:[%s2025 + $0x70] sm:$0xff] %v2042
                $region64: #{_lambda_.1} parent=58 // loop_footer
                  %s2023 = sadd.s32 1, %s2019
                $region65: #{_lambda_.1} parent=58 // loop_footer_branch
                  %2018 = sbr.rel target = $region61
                $region66: #{_lambda_.1} parent=58 // loop_exit
                  _
              $region59: #{_lambda_.1} parent=43 // pred_fallthru
                _
              // Predicated region
              $region67: #{_lambda_.1} parent=43 // pred_check
                _
              $region68: #{_lambda_.1} parent=43 // pred_check_branch
                %2045 = sbr.rel target = $region70
              $region69: #{_lambda_.1} parent=43 // pred_region
                _
              $region70: #{_lambda_.1} parent=43 // pred_fallthru
                _
            $region44: #{_lambda_.1} parent=39 // pred_fallthru
              _
            // Predicated region
            $region45: #{_lambda_.1} parent=39 // pred_check
              _
            $region46: #{_lambda_.1} parent=39 // pred_check_branch
              %1987 = sbr.rel target = $region48
            $region47: #{_lambda_.1} parent=39 // pred_region
              %s1989 = ssub.s32 256, 1
              loop: start=0, step=1, limit=1
              $region49: #{_lambda_.1} parent=47 // loop_pre_header
                _
              $region50: #{_lambda_.1} parent=47 // loop_header
                %s1991 = sphi 0, %s1995
                %p1992 = scmp.ge.s32.totalorder %s1991, 1
                %s1996 = sphi %s1975, %s1975
                %s1997 = sphi %s1981, %s1981
              $region51: #{_lambda_.1} parent=47 // loop_header_branch
                %1994 = sbr.rel (%p1992) target = $region55
              $region52: #{_lambda_.1} parent=47 // loop_body
                %v1998 = vld [vmem:[%s1996] sm:%s1989]
                %1999 = vst [vmem:[%s1997] sm:%s1989] %v1998
                %v2000 = vld [vmem:[%s1996 + $0x8] sm:%s1989]
                %2001 = vst [vmem:[%s1997 + $0x8] sm:%s1989] %v2000
                %v2002 = vld [vmem:[%s1996 + $0x10] sm:%s1989]
                %2003 = vst [vmem:[%s1997 + $0x10] sm:%s1989] %v2002
                %v2004 = vld [vmem:[%s1996 + $0x18] sm:%s1989]
                %2005 = vst [vmem:[%s1997 + $0x30] sm:%s1989] %v2004
                %v2006 = vld [vmem:[%s1996 + $0x20] sm:%s1989]
                %2007 = vst [vmem:[%s1997 + $0x38] sm:%s1989] %v2006
                %v2008 = vld [vmem:[%s1996 + $0x28] sm:%s1989]
                %2009 = vst [vmem:[%s1997 + $0x40] sm:%s1989] %v2008
                %v2010 = vld [vmem:[%s1996 + $0x30] sm:%s1989]
                %2011 = vst [vmem:[%s1997 + $0x60] sm:%s1989] %v2010
                %v2012 = vld [vmem:[%s1996 + $0x38] sm:%s1989]
                %2013 = vst [vmem:[%s1997 + $0x68] sm:%s1989] %v2012
                %v2014 = vld [vmem:[%s1996 + $0x40] sm:%s1989]
                %2015 = vst [vmem:[%s1997 + $0x70] sm:%s1989] %v2014
              $region53: #{_lambda_.1} parent=47 // loop_footer
                %s1995 = sadd.s32 1, %s1991
              $region54: #{_lambda_.1} parent=47 // loop_footer_branch
                %1990 = sbr.rel target = $region50
              $region55: #{_lambda_.1} parent=47 // loop_exit
                _
            $region48: #{_lambda_.1} parent=39 // pred_fallthru
              _
          $region40: #{_lambda_.1} parent=35 // pred_fallthru
            _
          %2046 = vnop
        $region36: #{_lambda_.1} parent=31 // pred_fallthru
          _
      $region32: #{_lambda_.1} parent=5 // pred_fallthru
        _
      %p2047 = scmp.le.s32.totalorder 2, %s9
      // Predicated region
      $region71: #{_lambda_.1} parent=5 // pred_check
        %p2048 = pneg %p2047
      $region72: #{_lambda_.1} parent=5 // pred_check_branch
        %2050 = sbr.rel (%p2048) target = $region74
      $region73: #{_lambda_.1} parent=5 // pred_region
        %s2051 = ssub.s32 %s9, 2
        // Predicated region
        $region75: #{_lambda_.1} parent=73 // pred_check
          %p2052 = pneg %p106
        $region76: #{_lambda_.1} parent=73 // pred_check_branch
          %2054 = sbr.rel (%p2052) target = $region78
        $region77: #{_lambda_.1} parent=73 // pred_region
          %s2055 = sand.u32 %s91, 1
          %s2056 = sand.u32 %s91, 1
          %s2057 = smul.addr %s2056, 72
          %s2058 = scalar_lea.vmem [#allocation2], %s2057
        $region78: #{_lambda_.1} parent=73 // pred_fallthru
          _
      $region74: #{_lambda_.1} parent=5 // pred_fallthru
        _
    $region6: #{_lambda_.1} parent=1 // loop_footer
      %s13 = sadd.s32 1, %s9
    $region7: #{_lambda_.1} parent=1 // loop_footer_branch
      %8 = sbr.rel target = $region3
    $region8: #{_lambda_.1} parent=1 // loop_exit
      _

</llo_original>
